<compile_context>
chip_gen: v5e
topology: v5e:2x2
jax: 0.10.0
libtpu: 0.0.40
codegen_flags: <defaults>
</compile_context>

<pallas_src>
import functools
import math

import jax
import jax.numpy as jnp
from jax.experimental import pallas as pl
from jax.experimental.pallas import tpu as pltpu


# ----------------------------------------------------------------------------
# helpers
# ----------------------------------------------------------------------------
def _round_up(x, m):
    return (x + m - 1) // m * m


def _nbytes(shape, dtype):
    return math.prod(shape) * jnp.dtype(dtype).itemsize


def _pad_gate_axis(w, h, hp):
    """(..., 4*h) -> (..., 4*hp): zero-pad each PyTorch gate block [i, f, g, o]."""
    lead = w.shape[:-1]
    w = w.reshape(lead + (4, h))
    pad = [(0, 0)] * len(lead) + [(0, 0), (0, hp - h)]
    return jnp.pad(w, pad).reshape(lead + (4 * hp,))


def _tpu_vmem_capacity_bytes():
    """Physical VMEM bytes per TensorCore; conservative fallback if query fails."""
    try:
        return int(pltpu.get_tpu_info().vmem_capacity_bytes)
    except Exception:
        return 64 << 20          # v7x per-TC VMEM (smallest current generation)


# ----------------------------------------------------------------------------
# Pallas kernel: fused LSTMCell + streamed O-tiled vocab projection + online LSE
#
# grid = (n_o_tiles,)
#   tile 0  : fused LSTM cell (one [x|h] @ [W_ih;W_hh] MXU pass), init softmax stats
#   tile j  : logits_j = h_new @ w_out[:, j] + b_out[:, j]  (bf16 MXU, f32 acc)
#             -> written raw to a lane-dense output tile; running max / sum-exp
#                folded into tiny VMEM scratch
#   last    : lse = m + log(l) written to a small second output; the wrapper does
#             the (logits - lse) subtract as one fused XLA elementwise op.
# ----------------------------------------------------------------------------
def _decoder_lstm_kernel(xh_ref, c_ref, wg_ref, bg_ref, wo_ref, bo_ref,
                         logits_ref, lse_ref, cnew_ref,
                         h_scr, m_scr, l_scr, *, hidden_pad):
    j = pl.program_id(0)
    H = hidden_pad

    @pl.when(j == 0)
    def _cell():
        c = c_ref[...]                                            # (Bp, Hp) f32
        gates = (jnp.dot(xh_ref[...], wg_ref[...],
                         preferred_element_type=jnp.float32)
                 + bg_ref[...])                                   # (Bp, 4Hp) f32
        i_g = jax.nn.sigmoid(gates[:, 0 * H:1 * H])
        f_g = jax.nn.sigmoid(gates[:, 1 * H:2 * H])
        g_g = jnp.tanh(gates[:, 2 * H:3 * H])
        o_g = jax.nn.sigmoid(gates[:, 3 * H:4 * H])
        c_new = f_g * c + i_g * g_g
        h_new = o_g * jnp.tanh(c_new)
        cnew_ref[...] = c_new
        h_scr[...] = h_new.astype(h_scr.dtype)                    # bf16 for MXU
        m_scr[...] = jnp.full_like(m_scr, -1e30)
        l_scr[...] = jnp.zeros_like(l_scr)

    # Streamed projection for O-tile j.  Padded vocab columns carry a baked-in
    # -1e30 bias (padded w_out columns are zero), so no per-tile masking here.
    logits = (jnp.dot(h_scr[...], wo_ref[...],
                      preferred_element_type=jnp.float32)
              + bo_ref[...])                                      # (Bp, TO) f32
    logits_ref[...] = logits                                      # raw, lane-dense

    m_prev = m_scr[...]
    m_new = jnp.maximum(m_prev, jnp.max(logits, axis=-1, keepdims=True))
    l_scr[...] = (l_scr[...] * jnp.exp(m_prev - m_new)
                  + jnp.sum(jnp.exp(logits - m_new), axis=-1, keepdims=True))
    m_scr[...] = m_new

    @pl.when(j == pl.num_programs(0) - 1)
    def _final():
        lse = m_scr[...] + jnp.log(l_scr[...])                    # (Bp, 1)
        lse_ref[...] = lse + jnp.zeros_like(lse_ref)              # lane-dense bcast


def decoder_lstm_pallas(xh, c0, w_gates, b_gates, w_out, b_out, *,
                        hidden_pad, tile_o, vmem_budget):
    """xh: (Bp, Ep+Hp) bf16; c0: (Bp, Hp) f32; w_gates: (Ep+Hp, 4Hp) bf16;
    b_gates: (1, 4Hp) f32; w_out: (Hp, Op) bf16; b_out: (1, Op) f32 (padded cols
    = -1e30).  Returns (raw logits (Bp, Op) f32, lse (Bp, 128) f32, c_new (Bp, Hp) f32)."""
    Bp, D = xh.shape
    Hp = hidden_pad
    G4 = 4 * Hp
    Op = w_out.shape[1]
    n_o = Op // tile_o

    kernel = functools.partial(_decoder_lstm_kernel, hidden_pad=Hp)

    # Worst-case VMEM request (assumes double-buffering everywhere) + headroom,
    # clamped to the generation-aware budget (never below the 32 MiB scoped default).
    worst = (2 * _nbytes((Bp, D), jnp.bfloat16)
             + 2 * _nbytes((Bp, Hp), jnp.float32)
             + 2 * _nbytes((D, G4), jnp.bfloat16)
             + 2 * _nbytes((1, G4), jnp.float32)
             + 2 * _nbytes((Hp, tile_o), jnp.bfloat16)
             + 2 * _nbytes((1, tile_o), jnp.float32)
             + 2 * _nbytes((Bp, tile_o), jnp.float32)
             + 2 * _nbytes((Bp, 128), jnp.float32)
             + 2 * _nbytes((Bp, Hp), jnp.float32)
             + _nbytes((Bp, Hp), jnp.bfloat16)
             + 2 * _nbytes((Bp, 128), jnp.float32))
    vmem_limit = int(max(32 << 20, min(worst + (4 << 20), vmem_budget)))

    out_shape = (jax.ShapeDtypeStruct((Bp, Op), jnp.float32),     # raw logits
                 jax.ShapeDtypeStruct((Bp, 128), jnp.float32),    # lse (bcast lanes)
                 jax.ShapeDtypeStruct((Bp, Hp), jnp.float32))     # c_new

    def build(single_buffer_invariants):
        inv = ({"pipeline_mode": pl.Buffered(1)}
               if single_buffer_invariants else {})
        grid_spec = pltpu.PrefetchScalarGridSpec(
            num_scalar_prefetch=0,
            grid=(n_o,),
            in_specs=[
                pl.BlockSpec((Bp, D), lambda j: (0, 0), **inv),        # [x | h]
                pl.BlockSpec((Bp, Hp), lambda j: (0, 0), **inv),       # c0
                pl.BlockSpec((D, G4), lambda j: (0, 0), **inv),        # fused gate W
                pl.BlockSpec((1, G4), lambda j: (0, 0), **inv),        # fused gate b
                # TODO(synk): pl.Buffered(3) on the two specs below if v5e profiling
                #             shows exposed DMA around the first (cell) tile.
                pl.BlockSpec((Hp, tile_o), lambda j: (0, j)),          # w_out tile
                pl.BlockSpec((1, tile_o), lambda j: (0, j)),           # b_out tile
            ],
            out_specs=(
                pl.BlockSpec((Bp, tile_o), lambda j: (0, j)),          # logits tile
                pl.BlockSpec((Bp, 128), lambda j: (0, 0)),             # lse
                pl.BlockSpec((Bp, Hp), lambda j: (0, 0)),              # c_new
            ),
            scratch_shapes=[
                pltpu.VMEM((Bp, Hp), jnp.bfloat16),   # h_new (reused by all tiles)
                pltpu.VMEM((Bp, 1), jnp.float32),     # running max
                pltpu.VMEM((Bp, 1), jnp.float32),     # running sum of exp
            ])
        return pl.pallas_call(
            kernel,
            grid_spec=grid_spec,
            out_shape=out_shape,
            input_output_aliases={1: 2},              # c0 buffer reused for c_new
            compiler_params=pltpu.CompilerParams(
                dimension_semantics=("arbitrary",),
                vmem_limit_bytes=vmem_limit))

    try:
        return build(True)(xh, c0, w_gates, b_gates, w_out, b_out)
    except Exception:
        # Fallback: default (double) buffering if pl.Buffered(1) is rejected here.
        return build(False)(xh, c0, w_gates, b_gates, w_out, b_out)


# ----------------------------------------------------------------------------
# Module wrapper (parameter setup + embedding gather + padding are JAX glue)
# ----------------------------------------------------------------------------
class DecoderLSTMPallas:
    def __init__(self, emb_size, hidden_size, output_size, pad_token=-1,
                 key=None, max_tile_o=2048):
        self.emb_size = emb_size
        self.hidden_size = hidden_size
        self.output_size = output_size
        # PyTorch: padding_idx=-1 wraps to output_size - 1; that row is zeroed.
        self.pad_idx = pad_token % output_size

        # lane-aligned padded sizes
        self.Ep = _round_up(emb_size, 128)
        self.Hp = _round_up(hidden_size, 128)
        D = self.Ep + self.Hp

        # --- generation-aware VMEM budget + O-tile sizing ----------------------
        vmem_cap = _tpu_vmem_capacity_bytes()
        self.vmem_budget = max(min(int(vmem_cap * 0.8), vmem_cap - (8 << 20)),
                               32 << 20)
        # bytes that are resident regardless of tile_o: single-buffered gate weight
        # + gate bias + headroom for activations / outputs / scratch
        fixed = (_nbytes((D, 4 * self.Hp), jnp.bfloat16)
                 + _nbytes((1, 4 * self.Hp), jnp.float32)
                 + (8 << 20))
        o128 = _round_up(output_size, 128)
        cap_t = max(128, min(2048, max_tile_o))
        cands = ([o128] if o128 <= cap_t else []) + \
                [t for t in (2048, 1024, 512, 256, 128) if t < o128 and t <= cap_t]
        tile_o = 128
        for t in cands:
            need = fixed + 2 * (_nbytes((self.Hp, t), jnp.bfloat16)
                                + _nbytes((1, t), jnp.float32))
            if need <= self.vmem_budget:
                tile_o = t
                break
        self.tile_o = tile_o
        self.Op = _round_up(output_size, tile_o)

        if key is None:
            key = jax.random.PRNGKey(0)
        k_emb, k_wih, k_whh, k_bih, k_bhh, k_wout, k_bout = jax.random.split(key, 7)

        # nn.Embedding: N(0, 1), padding row zeroed.
        emb = jax.random.normal(k_emb, (output_size, emb_size), jnp.float32)
        self.embedding = emb.at[self.pad_idx].set(0.0)

        # nn.LSTMCell / nn.Linear: uniform(-1/sqrt(H), 1/sqrt(H)).
        s = 1.0 / float(hidden_size) ** 0.5
        u = lambda k, shape: jax.random.uniform(k, shape, jnp.float32, -s, s)
        w_ih_t = u(k_wih, (4 * hidden_size, emb_size)).T            # (E, 4H)
        w_hh_t = u(k_whh, (4 * hidden_size, hidden_size)).T         # (H, 4H)
        bias = u(k_bih, (4 * hidden_size,)) + u(k_bhh, (4 * hidden_size,))
        w_out_t = u(k_wout, (output_size, hidden_size)).T           # (H, O)
        b_out = u(k_bout, (output_size,))

        # keep unpadded f32 originals for the pure-JAX reference
        self.w_ih_t_f32, self.w_hh_t_f32 = w_ih_t, w_hh_t
        self.bias_f32 = bias.reshape(1, -1)
        self.w_out_t_f32, self.b_out_f32 = w_out_t, b_out.reshape(1, -1)

        # ---- padded / fused / bf16 kernel parameters --------------------------
        E, H, O = emb_size, hidden_size, output_size
        Ep, Hp, Op = self.Ep, self.Hp, self.Op
        wih_p = jnp.zeros((Ep, 4 * Hp), jnp.float32).at[:E].set(
            _pad_gate_axis(w_ih_t, H, Hp))
        whh_p = jnp.zeros((Hp, 4 * Hp), jnp.float32).at[:H].set(
            _pad_gate_axis(w_hh_t, H, Hp))
        # stacked [W_ih ; W_hh] for the single fused gate matmul, bf16
        self.w_gates = jnp.concatenate([wih_p, whh_p], axis=0).astype(jnp.bfloat16)
        self.b_gates = _pad_gate_axis(bias.reshape(1, -1), H, Hp)   # (1, 4Hp) f32
        self.w_out = jnp.zeros((Hp, Op), jnp.bfloat16).at[:H, :O].set(
            w_out_t.astype(jnp.bfloat16))
        # vocab-pad mask baked into the bias: padded columns get -1e30 so they
        # never win the max nor contribute to the sum-of-exp (no in-kernel mask).
        self.b_out = jnp.full((1, Op), -1e30, jnp.float32).at[:, :O].set(b_out)

    def __call__(self, tokens, hidden):
        """tokens: (B,) int32; hidden: ((B,H), (B,H)). Returns ((B,O), (B,H))."""
        h0, c0 = hidden
        B = tokens.shape[0]
        Bp = _round_up(B, 8)
        E, H = self.emb_size, self.hidden_size

        # embedding gather (glue); negative ids wrap like PyTorch padding_idx=-1
        idx = jnp.mod(tokens, self.output_size)
        x = jnp.take(self.embedding, idx, axis=0)                    # (B, E) f32

        # build padded, concatenated [x | h] operand (zeros are exact no-ops)
        xh = jnp.zeros((Bp, self.Ep + self.Hp), jnp.float32)
        xh = xh.at[:B, :E].set(x)
        xh = xh.at[:B, self.Ep:self.Ep + H].set(h0)
        c0_p = jnp.zeros((Bp, self.Hp), jnp.float32).at[:B, :H].set(c0)

        logits, lse, c_new = decoder_lstm_pallas(
            xh.astype(jnp.bfloat16), c0_p,
            self.w_gates, self.b_gates, self.w_out, self.b_out,
            hidden_pad=self.Hp, tile_o=self.tile_o, vmem_budget=self.vmem_budget)

        # final normalization: one fused XLA elementwise op over (B, O)
        log_p = logits[:B, :self.output_size] - lse[:B, :1]
        return log_p, c_new[:B, :H]


# ----------------------------------------------------------------------------
# Pure-JAX reference (mirrors kernel precision: bf16 matmul operands, f32 acc)
# ----------------------------------------------------------------------------
def _reference(model, tokens, hidden):
    h0, c0 = hidden
    idx = jnp.mod(tokens, model.output_size)
    x = jnp.take(model.embedding, idx, axis=0)
    bdot = lambda a, b: jnp.dot(a.astype(jnp.bfloat16), b.astype(jnp.bfloat16),
                                preferred_element_type=jnp.float32)
    gates = bdot(x, model.w_ih_t_f32) + bdot(h0, model.w_hh_t_f32) + model.bias_f32
    H = model.hidden_size
    i = jax.nn.sigmoid(gates[:, :H])
    f = jax.nn.sigmoid(gates[:, H:2 * H])
    g = jnp.tanh(gates[:, 2 * H:3 * H])
    o = jax.nn.sigmoid(gates[:, 3 * H:4 * H])
    c_new = f * c0 + i * g
    h_new = o * jnp.tanh(c_new)
    logits = bdot(h_new, model.w_out_t_f32) + model.b_out_f32
    return jax.nn.log_softmax(logits, axis=1), c_new


if __name__ == "__main__":
    key = jax.random.PRNGKey(0)

    def run_case(B, E, H, O, max_tile_o, case_key):
        k_model, k_tok, k_h, k_c = jax.random.split(case_key, 4)
        model = DecoderLSTMPallas(emb_size=E, hidden_size=H, output_size=O,
                                  pad_token=-1, key=k_model, max_tile_o=max_tile_o)
        tokens = jax.random.randint(k_tok, (B,), 0, O, dtype=jnp.int32)
        h0 = jax.random.normal(k_h, (B, H), jnp.float32)
        c0 = jax.random.normal(k_c, (B, H), jnp.float32)

        log_probs, c_new = model(tokens, (h0, c0))
        jax.block_until_ready((log_probs, c_new))

        ref_lp, ref_c = _reference(model, tokens, (h0, c0))
        assert log_probs.shape == (B, O) and c_new.shape == (B, H)
        assert jnp.allclose(log_probs, ref_lp, atol=2e-3, rtol=2e-3), \
            float(jnp.max(jnp.abs(log_probs - ref_lp)))
        assert jnp.allclose(c_new, ref_c, atol=2e-3, rtol=2e-3), \
            float(jnp.max(jnp.abs(c_new - ref_c)))

    k1, k2 = jax.random.split(key)
    # small single-tile case (grid of 1)
    run_case(B=4, E=16, H=32, O=20, max_tile_o=2048, case_key=k1)
    # multi-tile case: O=300 with tile_o capped at 128 -> 3 vocab tiles,
    # exercises the streamed online-LSE accumulation across grid steps.
    run_case(B=4, E=16, H=32, O=300, max_tile_o=128, case_key=k2)

    print("KERNEL_OK")
</pallas_src>

<mosaic_0001>
module attributes {stable_mosaic.version = 11 : i64} {
  func.func @_decoder_lstm_kernel(%arg0: i32, %arg1: memref<8x256xbf16, #tpu.memory_space<vmem>>, %arg2: memref<8x128xf32, #tpu.memory_space<vmem>>, %arg3: memref<256x512xbf16, #tpu.memory_space<vmem>>, %arg4: memref<1x512xf32, #tpu.memory_space<vmem>>, %arg5: memref<128x128xbf16, #tpu.memory_space<vmem>>, %arg6: memref<1x128xf32, #tpu.memory_space<vmem>>, %arg7: memref<8x128xf32, #tpu.memory_space<vmem>>, %arg8: memref<8x128xf32, #tpu.memory_space<vmem>>, %arg9: memref<8x128xf32, #tpu.memory_space<vmem>>, %arg10: memref<8x128xbf16, #tpu.memory_space<vmem>>, %arg11: memref<8x1xf32, #tpu.memory_space<vmem>>, %arg12: memref<8x1xf32, #tpu.memory_space<vmem>>) attributes {dimension_semantics = [#tpu.dimension_semantics<arbitrary>], iteration_bounds = array<i64: 1>, scalar_prefetch = 0 : i64, scratch_operands = 3 : i64, tpu.core_type = #tpu.core_type<tc>, window_params = [{pipeline_mode = #tpu.pipeline_mode<synchronous>, transform_indices = @transform_0, window_bounds = array<i64: 8, 256>}, {pipeline_mode = #tpu.pipeline_mode<synchronous>, transform_indices = @transform_1, window_bounds = array<i64: 8, 128>}, {pipeline_mode = #tpu.pipeline_mode<synchronous>, transform_indices = @transform_2, window_bounds = array<i64: 256, 512>}, {pipeline_mode = #tpu.pipeline_mode<synchronous>, transform_indices = @transform_3, window_bounds = array<i64: 1, 512>}, {transform_indices = @transform_4, window_bounds = array<i64: 128, 128>}, {transform_indices = @transform_5, window_bounds = array<i64: 1, 128>}, {transform_indices = @transform_6, window_bounds = array<i64: 8, 128>}, {pipeline_mode = #tpu.pipeline_mode<synchronous>, transform_indices = @transform_7, window_bounds = array<i64: 8, 128>}, {pipeline_mode = #tpu.pipeline_mode<synchronous>, transform_indices = @transform_8, window_bounds = array<i64: 8, 128>}]} {
    %c0_i32 = arith.constant 0 : i32
    %0 = arith.cmpi eq, %arg0, %c0_i32 : i32
    %1 = arith.extui %0 : i1 to i32
    %c0_i32_0 = arith.constant 0 : i32
    %2 = arith.cmpi ne, %1, %c0_i32_0 : i32
    scf.if %2 {
      %c0_20 = arith.constant 0 : index
      %c0_21 = arith.constant 0 : index
      %29 = vector.load %arg2[%c0_20, %c0_21] : memref<8x128xf32, #tpu.memory_space<vmem>>, vector<8x128xf32>
      %c0_22 = arith.constant 0 : index
      %c0_23 = arith.constant 0 : index
      %30 = vector.load %arg1[%c0_22, %c0_23] : memref<8x256xbf16, #tpu.memory_space<vmem>>, vector<8x256xbf16>
      %c0_24 = arith.constant 0 : index
      %c0_25 = arith.constant 0 : index
      %31 = vector.load %arg3[%c0_24, %c0_25] : memref<256x512xbf16, #tpu.memory_space<vmem>>, vector<256x512xbf16>
      %cst_26 = arith.constant dense<0.000000e+00> : vector<8x512xf32>
      %32 = tpu.matmul %30, %31, %cst_26 {dimension_numbers = #tpu.dot_dimension_numbers<[1], [0], [0], [1], [0, 0, 1, 1], [], []>} : vector<8x256xbf16>, vector<256x512xbf16>, vector<8x512xf32> -> vector<8x512xf32>
      %c0_27 = arith.constant 0 : index
      %c0_28 = arith.constant 0 : index
      %33 = vector.load %arg4[%c0_27, %c0_28] : memref<1x512xf32, #tpu.memory_space<vmem>>, vector<1x512xf32>
      %34 = vector.broadcast %33 : vector<1x512xf32> to vector<8x512xf32>
      %35 = arith.addf %32, %34 : vector<8x512xf32>
      %36 = vector.extract_strided_slice %35 {offsets = [0, 0], sizes = [8, 128], strides = [1, 1]} : vector<8x512xf32> to vector<8x128xf32>
      %37 = arith.negf %36 : vector<8x128xf32>
      %38 = math.exp %37 : vector<8x128xf32>
      %cst_29 = arith.constant 1.000000e+00 : f32
      %39 = vector.broadcast %cst_29 : f32 to vector<8x128xf32>
      %40 = arith.addf %39, %38 : vector<8x128xf32>
      %41 = arith.divf %39, %40 : vector<8x128xf32>
      %42 = vector.extract_strided_slice %35 {offsets = [0, 128], sizes = [8, 128], strides = [1, 1]} : vector<8x512xf32> to vector<8x128xf32>
      %43 = arith.negf %42 : vector<8x128xf32>
      %44 = math.exp %43 : vector<8x128xf32>
      %cst_30 = arith.constant 1.000000e+00 : f32
      %45 = vector.broadcast %cst_30 : f32 to vector<8x128xf32>
      %46 = arith.addf %45, %44 : vector<8x128xf32>
      %47 = arith.divf %45, %46 : vector<8x128xf32>
      %48 = vector.extract_strided_slice %35 {offsets = [0, 256], sizes = [8, 128], strides = [1, 1]} : vector<8x512xf32> to vector<8x128xf32>
      %49 = math.tanh %48 : vector<8x128xf32>
      %50 = vector.extract_strided_slice %35 {offsets = [0, 384], sizes = [8, 128], strides = [1, 1]} : vector<8x512xf32> to vector<8x128xf32>
      %51 = arith.negf %50 : vector<8x128xf32>
      %52 = math.exp %51 : vector<8x128xf32>
      %cst_31 = arith.constant 1.000000e+00 : f32
      %53 = vector.broadcast %cst_31 : f32 to vector<8x128xf32>
      %54 = arith.addf %53, %52 : vector<8x128xf32>
      %55 = arith.divf %53, %54 : vector<8x128xf32>
      %56 = arith.mulf %47, %29 : vector<8x128xf32>
      %57 = arith.mulf %41, %49 : vector<8x128xf32>
      %58 = arith.addf %56, %57 : vector<8x128xf32>
      %59 = math.tanh %58 : vector<8x128xf32>
      %60 = arith.mulf %55, %59 : vector<8x128xf32>
      %c0_32 = arith.constant 0 : index
      %c0_33 = arith.constant 0 : index
      %61 = vector.load %arg9[%c0_32, %c0_33] : memref<8x128xf32, #tpu.memory_space<vmem>>, vector<8x128xf32>
      tpu.vector_store %arg9[%c0_32, %c0_33], %58 {strides = array<i32>} : memref<8x128xf32, #tpu.memory_space<vmem>>, vector<8x128xf32>,
      %62 = arith.truncf %60 : vector<8x128xf32> to vector<8x128xbf16>
      %c0_34 = arith.constant 0 : index
      %c0_35 = arith.constant 0 : index
      %63 = vector.load %arg10[%c0_34, %c0_35] : memref<8x128xbf16, #tpu.memory_space<vmem>>, vector<8x128xbf16>
      tpu.vector_store %arg10[%c0_34, %c0_35], %62 {strides = array<i32>} : memref<8x128xbf16, #tpu.memory_space<vmem>>, vector<8x128xbf16>,
      %cst_36 = arith.constant -1.000000e+30 : f32
      %64 = vector.broadcast %cst_36 : f32 to vector<8x1xf32>
      %c0_37 = arith.constant 0 : index
      %c0_38 = arith.constant 0 : index
      %65 = vector.load %arg11[%c0_37, %c0_38] : memref<8x1xf32, #tpu.memory_space<vmem>>, vector<8x1xf32>
      tpu.vector_store %arg11[%c0_37, %c0_38], %64 {strides = array<i32>} : memref<8x1xf32, #tpu.memory_space<vmem>>, vector<8x1xf32>,
      %cst_39 = arith.constant 0.000000e+00 : f32
      %66 = vector.broadcast %cst_39 : f32 to vector<8x1xf32>
      %c0_40 = arith.constant 0 : index
      %c0_41 = arith.constant 0 : index
      %67 = vector.load %arg12[%c0_40, %c0_41] : memref<8x1xf32, #tpu.memory_space<vmem>>, vector<8x1xf32>
      tpu.vector_store %arg12[%c0_40, %c0_41], %66 {strides = array<i32>} : memref<8x1xf32, #tpu.memory_space<vmem>>, vector<8x1xf32>,
    } else {
    }
    %c0 = arith.constant 0 : index
    %c0_1 = arith.constant 0 : index
    %3 = vector.load %arg10[%c0, %c0_1] : memref<8x128xbf16, #tpu.memory_space<vmem>>, vector<8x128xbf16>
    %c0_2 = arith.constant 0 : index
    %c0_3 = arith.constant 0 : index
    %4 = vector.load %arg5[%c0_2, %c0_3] : memref<128x128xbf16, #tpu.memory_space<vmem>>, vector<128x128xbf16>
    %cst = arith.constant dense<0.000000e+00> : vector<8x128xf32>
    %5 = tpu.matmul %3, %4, %cst {dimension_numbers = #tpu.dot_dimension_numbers<[1], [0], [0], [1], [0, 0, 1, 1], [], []>} : vector<8x128xbf16>, vector<128x128xbf16>, vector<8x128xf32> -> vector<8x128xf32>
    %c0_4 = arith.constant 0 : index
    %c0_5 = arith.constant 0 : index
    %6 = vector.load %arg6[%c0_4, %c0_5] : memref<1x128xf32, #tpu.memory_space<vmem>>, vector<1x128xf32>
    %7 = vector.broadcast %6 : vector<1x128xf32> to vector<8x128xf32>
    %8 = arith.addf %5, %7 : vector<8x128xf32>
    %c0_6 = arith.constant 0 : index
    %c0_7 = arith.constant 0 : index
    %9 = vector.load %arg7[%c0_6, %c0_7] : memref<8x128xf32, #tpu.memory_space<vmem>>, vector<8x128xf32>
    tpu.vector_store %arg7[%c0_6, %c0_7], %8 {strides = array<i32>} : memref<8x128xf32, #tpu.memory_space<vmem>>, vector<8x128xf32>,
    %c0_8 = arith.constant 0 : index
    %c0_9 = arith.constant 0 : index
    %10 = vector.load %arg11[%c0_8, %c0_9] : memref<8x1xf32, #tpu.memory_space<vmem>>, vector<8x1xf32>
    %cst_10 = arith.constant dense<0xFF800000> : vector<8xf32>
    %11 = vector.multi_reduction <maximumf>, %8, %cst_10 [1] : vector<8x128xf32> to vector<8xf32>
    %12 = vector.shape_cast %11 : vector<8xf32> to vector<8x1xf32>
    %13 = arith.maximumf %10, %12 : vector<8x1xf32>
    %c0_11 = arith.constant 0 : index
    %c0_12 = arith.constant 0 : index
    %14 = vector.load %arg12[%c0_11, %c0_12] : memref<8x1xf32, #tpu.memory_space<vmem>>, vector<8x1xf32>
    %15 = arith.subf %10, %13 : vector<8x1xf32>
    %16 = math.exp %15 : vector<8x1xf32>
    %17 = arith.mulf %14, %16 : vector<8x1xf32>
    %18 = vector.broadcast %13 : vector<8x1xf32> to vector<8x128xf32>
    %19 = arith.subf %8, %18 : vector<8x128xf32>
    %20 = math.exp %19 : vector<8x128xf32>
    %cst_13 = arith.constant dense<0.000000e+00> : vector<8xf32>
    %21 = vector.multi_reduction <add>, %20, %cst_13 [1] : vector<8x128xf32> to vector<8xf32>
    %22 = vector.shape_cast %21 : vector<8xf32> to vector<8x1xf32>
    %23 = arith.addf %17, %22 : vector<8x1xf32>
    %c0_14 = arith.constant 0 : index
    %c0_15 = arith.constant 0 : index
    %24 = vector.load %arg12[%c0_14, %c0_15] : memref<8x1xf32, #tpu.memory_space<vmem>>, vector<8x1xf32>
    tpu.vector_store %arg12[%c0_14, %c0_15], %23 {strides = array<i32>} : memref<8x1xf32, #tpu.memory_space<vmem>>, vector<8x1xf32>,
    %c0_16 = arith.constant 0 : index
    %c0_17 = arith.constant 0 : index
    %25 = vector.load %arg11[%c0_16, %c0_17] : memref<8x1xf32, #tpu.memory_space<vmem>>, vector<8x1xf32>
    tpu.vector_store %arg11[%c0_16, %c0_17], %13 {strides = array<i32>} : memref<8x1xf32, #tpu.memory_space<vmem>>, vector<8x1xf32>,
    %c0_i32_18 = arith.constant 0 : i32
    %26 = arith.cmpi eq, %arg0, %c0_i32_18 : i32
    %27 = arith.extui %26 : i1 to i32
    %c0_i32_19 = arith.constant 0 : i32
    %28 = arith.cmpi ne, %27, %c0_i32_19 : i32
    scf.if %28 {
      %c0_20 = arith.constant 0 : index
      %c0_21 = arith.constant 0 : index
      %29 = vector.load %arg11[%c0_20, %c0_21] : memref<8x1xf32, #tpu.memory_space<vmem>>, vector<8x1xf32>
      %c0_22 = arith.constant 0 : index
      %c0_23 = arith.constant 0 : index
      %30 = vector.load %arg12[%c0_22, %c0_23] : memref<8x1xf32, #tpu.memory_space<vmem>>, vector<8x1xf32>
      %31 = math.log %30 : vector<8x1xf32>
      %32 = arith.addf %29, %31 : vector<8x1xf32>
      %cst_24 = arith.constant 0.000000e+00 : f32
      %33 = vector.broadcast %cst_24 : f32 to vector<8x128xf32>
      %34 = vector.broadcast %32 : vector<8x1xf32> to vector<8x128xf32>
      %35 = arith.addf %34, %33 : vector<8x128xf32>
      %c0_25 = arith.constant 0 : index
      %c0_26 = arith.constant 0 : index
      %36 = vector.load %arg8[%c0_25, %c0_26] : memref<8x128xf32, #tpu.memory_space<vmem>>, vector<8x128xf32>
      tpu.vector_store %arg8[%c0_25, %c0_26], %35 {strides = array<i32>} : memref<8x128xf32, #tpu.memory_space<vmem>>, vector<8x128xf32>,
    } else {
    }
    return
  }
  func.func @transform_0(%arg0: i32) -> (i32, i32) {
    %c0_i32 = arith.constant 0 : i32
    %c0_i32_0 = arith.constant 0 : i32
    %c0_i32_1 = arith.constant 0 : i32
    return %c0_i32, %c0_i32_0 : i32, i32
  }
  func.func @transform_1(%arg0: i32) -> (i32, i32) {
    %c0_i32 = arith.constant 0 : i32
    %c0_i32_0 = arith.constant 0 : i32
    %c0_i32_1 = arith.constant 0 : i32
    return %c0_i32, %c0_i32_0 : i32, i32
  }
  func.func @transform_2(%arg0: i32) -> (i32, i32) {
    %c0_i32 = arith.constant 0 : i32
    %c0_i32_0 = arith.constant 0 : i32
    %c0_i32_1 = arith.constant 0 : i32
    return %c0_i32, %c0_i32_0 : i32, i32
  }
  func.func @transform_3(%arg0: i32) -> (i32, i32) {
    %c0_i32 = arith.constant 0 : i32
    %c0_i32_0 = arith.constant 0 : i32
    %c0_i32_1 = arith.constant 0 : i32
    return %c0_i32, %c0_i32_0 : i32, i32
  }
  func.func @transform_4(%arg0: i32) -> (i32, i32) {
    %c0_i32 = arith.constant 0 : i32
    %c0_i32_0 = arith.constant 0 : i32
    return %c0_i32, %arg0 : i32, i32
  }
  func.func @transform_5(%arg0: i32) -> (i32, i32) {
    %c0_i32 = arith.constant 0 : i32
    %c0_i32_0 = arith.constant 0 : i32
    return %c0_i32, %arg0 : i32, i32
  }
  func.func @transform_6(%arg0: i32) -> (i32, i32) {
    %c0_i32 = arith.constant 0 : i32
    %c0_i32_0 = arith.constant 0 : i32
    return %c0_i32, %arg0 : i32, i32
  }
  func.func @transform_7(%arg0: i32) -> (i32, i32) {
    %c0_i32 = arith.constant 0 : i32
    %c0_i32_0 = arith.constant 0 : i32
    %c0_i32_1 = arith.constant 0 : i32
    return %c0_i32, %c0_i32_0 : i32, i32
  }
  func.func @transform_8(%arg0: i32) -> (i32, i32) {
    %c0_i32 = arith.constant 0 : i32
    %c0_i32_0 = arith.constant 0 : i32
    %c0_i32_1 = arith.constant 0 : i32
    return %c0_i32, %c0_i32_0 : i32, i32
  }
}

module attributes {stable_mosaic.version = 11 : i64} {
  func.func @_decoder_lstm_kernel(%arg0: i32, %arg1: memref<8x256xbf16, #tpu.memory_space<vmem>>, %arg2: memref<8x128xf32, #tpu.memory_space<vmem>>, %arg3: memref<256x512xbf16, #tpu.memory_space<vmem>>, %arg4: memref<1x512xf32, #tpu.memory_space<vmem>>, %arg5: memref<128x128xbf16, #tpu.memory_space<vmem>>, %arg6: memref<1x128xf32, #tpu.memory_space<vmem>>, %arg7: memref<8x128xf32, #tpu.memory_space<vmem>>, %arg8: memref<8x128xf32, #tpu.memory_space<vmem>>, %arg9: memref<8x128xf32, #tpu.memory_space<vmem>>, %arg10: memref<8x128xbf16, #tpu.memory_space<vmem>>, %arg11: memref<8x1xf32, #tpu.memory_space<vmem>>, %arg12: memref<8x1xf32, #tpu.memory_space<vmem>>) attributes {dimension_semantics = [#tpu.dimension_semantics<arbitrary>], iteration_bounds = array<i64: 1>, scalar_prefetch = 0 : i64, scratch_operands = 3 : i64, tpu.core_type = #tpu.core_type<tc>, window_params = [{pipeline_mode = #tpu.pipeline_mode<synchronous>, transform_indices = @transform_0, window_bounds = array<i64: 8, 256>}, {pipeline_mode = #tpu.pipeline_mode<synchronous>, transform_indices = @transform_1, window_bounds = array<i64: 8, 128>}, {pipeline_mode = #tpu.pipeline_mode<synchronous>, transform_indices = @transform_2, window_bounds = array<i64: 256, 512>}, {pipeline_mode = #tpu.pipeline_mode<synchronous>, transform_indices = @transform_3, window_bounds = array<i64: 1, 512>}, {transform_indices = @transform_4, window_bounds = array<i64: 128, 128>}, {transform_indices = @transform_5, window_bounds = array<i64: 1, 128>}, {transform_indices = @transform_6, window_bounds = array<i64: 8, 128>}, {pipeline_mode = #tpu.pipeline_mode<synchronous>, transform_indices = @transform_7, window_bounds = array<i64: 8, 128>}, {pipeline_mode = #tpu.pipeline_mode<synchronous>, transform_indices = @transform_8, window_bounds = array<i64: 8, 128>}]} {
    %c0_i32 = arith.constant 0 : i32
    %0 = arith.cmpi eq, %arg0, %c0_i32 : i32
    %1 = arith.extui %0 : i1 to i32
    %c0_i32_0 = arith.constant 0 : i32
    %2 = arith.cmpi ne, %1, %c0_i32_0 : i32
    scf.if %2 {
      %c0_20 = arith.constant 0 : index
      %c0_21 = arith.constant 0 : index
      %29 = vector.load %arg2[%c0_20, %c0_21] : memref<8x128xf32, #tpu.memory_space<vmem>>, vector<8x128xf32>
      %c0_22 = arith.constant 0 : index
      %c0_23 = arith.constant 0 : index
      %30 = vector.load %arg1[%c0_22, %c0_23] : memref<8x256xbf16, #tpu.memory_space<vmem>>, vector<8x256xbf16>
      %c0_24 = arith.constant 0 : index
      %c0_25 = arith.constant 0 : index
      %31 = vector.load %arg3[%c0_24, %c0_25] : memref<256x512xbf16, #tpu.memory_space<vmem>>, vector<256x512xbf16>
      %cst_26 = arith.constant dense<0.000000e+00> : vector<8x512xf32>
      %32 = tpu.matmul %30, %31, %cst_26 {dimension_numbers = #tpu.dot_dimension_numbers<[1], [0], [0], [1], [0, 0, 1, 1], [], []>} : vector<8x256xbf16>, vector<256x512xbf16>, vector<8x512xf32> -> vector<8x512xf32>
      %c0_27 = arith.constant 0 : index
      %c0_28 = arith.constant 0 : index
      %33 = vector.load %arg4[%c0_27, %c0_28] : memref<1x512xf32, #tpu.memory_space<vmem>>, vector<1x512xf32>
      %34 = vector.broadcast %33 : vector<1x512xf32> to vector<8x512xf32>
      %35 = arith.addf %32, %34 : vector<8x512xf32>
      %36 = vector.extract_strided_slice %35 {offsets = [0, 0], sizes = [8, 128], strides = [1, 1]} : vector<8x512xf32> to vector<8x128xf32>
      %37 = arith.negf %36 : vector<8x128xf32>
      %38 = math.exp %37 : vector<8x128xf32>
      %cst_29 = arith.constant 1.000000e+00 : f32
      %39 = vector.broadcast %cst_29 : f32 to vector<8x128xf32>
      %40 = arith.addf %39, %38 : vector<8x128xf32>
      %41 = arith.divf %39, %40 : vector<8x128xf32>
      %42 = vector.extract_strided_slice %35 {offsets = [0, 128], sizes = [8, 128], strides = [1, 1]} : vector<8x512xf32> to vector<8x128xf32>
      %43 = arith.negf %42 : vector<8x128xf32>
      %44 = math.exp %43 : vector<8x128xf32>
      %cst_30 = arith.constant 1.000000e+00 : f32
      %45 = vector.broadcast %cst_30 : f32 to vector<8x128xf32>
      %46 = arith.addf %45, %44 : vector<8x128xf32>
      %47 = arith.divf %45, %46 : vector<8x128xf32>
      %48 = vector.extract_strided_slice %35 {offsets = [0, 256], sizes = [8, 128], strides = [1, 1]} : vector<8x512xf32> to vector<8x128xf32>
      %49 = math.tanh %48 : vector<8x128xf32>
      %50 = vector.extract_strided_slice %35 {offsets = [0, 384], sizes = [8, 128], strides = [1, 1]} : vector<8x512xf32> to vector<8x128xf32>
      %51 = arith.negf %50 : vector<8x128xf32>
      %52 = math.exp %51 : vector<8x128xf32>
      %cst_31 = arith.constant 1.000000e+00 : f32
      %53 = vector.broadcast %cst_31 : f32 to vector<8x128xf32>
      %54 = arith.addf %53, %52 : vector<8x128xf32>
      %55 = arith.divf %53, %54 : vector<8x128xf32>
      %56 = arith.mulf %47, %29 : vector<8x128xf32>
      %57 = arith.mulf %41, %49 : vector<8x128xf32>
      %58 = arith.addf %56, %57 : vector<8x128xf32>
      %59 = math.tanh %58 : vector<8x128xf32>
      %60 = arith.mulf %55, %59 : vector<8x128xf32>
      %c0_32 = arith.constant 0 : index
      %c0_33 = arith.constant 0 : index
      %61 = vector.load %arg9[%c0_32, %c0_33] : memref<8x128xf32, #tpu.memory_space<vmem>>, vector<8x128xf32>
      tpu.vector_store %arg9[%c0_32, %c0_33], %58 {strides = array<i32>} : memref<8x128xf32, #tpu.memory_space<vmem>>, vector<8x128xf32>,
      %62 = arith.truncf %60 : vector<8x128xf32> to vector<8x128xbf16>
      %c0_34 = arith.constant 0 : index
      %c0_35 = arith.constant 0 : index
      %63 = vector.load %arg10[%c0_34, %c0_35] : memref<8x128xbf16, #tpu.memory_space<vmem>>, vector<8x128xbf16>
      tpu.vector_store %arg10[%c0_34, %c0_35], %62 {strides = array<i32>} : memref<8x128xbf16, #tpu.memory_space<vmem>>, vector<8x128xbf16>,
      %cst_36 = arith.constant -1.000000e+30 : f32
      %64 = vector.broadcast %cst_36 : f32 to vector<8x1xf32>
      %c0_37 = arith.constant 0 : index
      %c0_38 = arith.constant 0 : index
      %65 = vector.load %arg11[%c0_37, %c0_38] : memref<8x1xf32, #tpu.memory_space<vmem>>, vector<8x1xf32>
      tpu.vector_store %arg11[%c0_37, %c0_38], %64 {strides = array<i32>} : memref<8x1xf32, #tpu.memory_space<vmem>>, vector<8x1xf32>,
      %cst_39 = arith.constant 0.000000e+00 : f32
      %66 = vector.broadcast %cst_39 : f32 to vector<8x1xf32>
      %c0_40 = arith.constant 0 : index
      %c0_41 = arith.constant 0 : index
      %67 = vector.load %arg12[%c0_40, %c0_41] : memref<8x1xf32, #tpu.memory_space<vmem>>, vector<8x1xf32>
      tpu.vector_store %arg12[%c0_40, %c0_41], %66 {strides = array<i32>} : memref<8x1xf32, #tpu.memory_space<vmem>>, vector<8x1xf32>,
    } else {
    }
    %c0 = arith.constant 0 : index
    %c0_1 = arith.constant 0 : index
    %3 = vector.load %arg10[%c0, %c0_1] : memref<8x128xbf16, #tpu.memory_space<vmem>>, vector<8x128xbf16>
    %c0_2 = arith.constant 0 : index
    %c0_3 = arith.constant 0 : index
    %4 = vector.load %arg5[%c0_2, %c0_3] : memref<128x128xbf16, #tpu.memory_space<vmem>>, vector<128x128xbf16>
    %cst = arith.constant dense<0.000000e+00> : vector<8x128xf32>
    %5 = tpu.matmul %3, %4, %cst {dimension_numbers = #tpu.dot_dimension_numbers<[1], [0], [0], [1], [0, 0, 1, 1], [], []>} : vector<8x128xbf16>, vector<128x128xbf16>, vector<8x128xf32> -> vector<8x128xf32>
    %c0_4 = arith.constant 0 : index
    %c0_5 = arith.constant 0 : index
    %6 = vector.load %arg6[%c0_4, %c0_5] : memref<1x128xf32, #tpu.memory_space<vmem>>, vector<1x128xf32>
    %7 = vector.broadcast %6 : vector<1x128xf32> to vector<8x128xf32>
    %8 = arith.addf %5, %7 : vector<8x128xf32>
    %c0_6 = arith.constant 0 : index
    %c0_7 = arith.constant 0 : index
    %9 = vector.load %arg7[%c0_6, %c0_7] : memref<8x128xf32, #tpu.memory_space<vmem>>, vector<8x128xf32>
    tpu.vector_store %arg7[%c0_6, %c0_7], %8 {strides = array<i32>} : memref<8x128xf32, #tpu.memory_space<vmem>>, vector<8x128xf32>,
    %c0_8 = arith.constant 0 : index
    %c0_9 = arith.constant 0 : index
    %10 = vector.load %arg11[%c0_8, %c0_9] : memref<8x1xf32, #tpu.memory_space<vmem>>, vector<8x1xf32>
    %cst_10 = arith.constant dense<0xFF800000> : vector<8xf32>
    %11 = vector.multi_reduction <maximumf>, %8, %cst_10 [1] : vector<8x128xf32> to vector<8xf32>
    %12 = vector.shape_cast %11 : vector<8xf32> to vector<8x1xf32>
    %13 = arith.maximumf %10, %12 : vector<8x1xf32>
    %c0_11 = arith.constant 0 : index
    %c0_12 = arith.constant 0 : index
    %14 = vector.load %arg12[%c0_11, %c0_12] : memref<8x1xf32, #tpu.memory_space<vmem>>, vector<8x1xf32>
    %15 = arith.subf %10, %13 : vector<8x1xf32>
    %16 = math.exp %15 : vector<8x1xf32>
    %17 = arith.mulf %14, %16 : vector<8x1xf32>
    %18 = vector.broadcast %13 : vector<8x1xf32> to vector<8x128xf32>
    %19 = arith.subf %8, %18 : vector<8x128xf32>
    %20 = math.exp %19 : vector<8x128xf32>
    %cst_13 = arith.constant dense<0.000000e+00> : vector<8xf32>
    %21 = vector.multi_reduction <add>, %20, %cst_13 [1] : vector<8x128xf32> to vector<8xf32>
    %22 = vector.shape_cast %21 : vector<8xf32> to vector<8x1xf32>
    %23 = arith.addf %17, %22 : vector<8x1xf32>
    %c0_14 = arith.constant 0 : index
    %c0_15 = arith.constant 0 : index
    %24 = vector.load %arg12[%c0_14, %c0_15] : memref<8x1xf32, #tpu.memory_space<vmem>>, vector<8x1xf32>
    tpu.vector_store %arg12[%c0_14, %c0_15], %23 {strides = array<i32>} : memref<8x1xf32, #tpu.memory_space<vmem>>, vector<8x1xf32>,
    %c0_16 = arith.constant 0 : index
    %c0_17 = arith.constant 0 : index
    %25 = vector.load %arg11[%c0_16, %c0_17] : memref<8x1xf32, #tpu.memory_space<vmem>>, vector<8x1xf32>
    tpu.vector_store %arg11[%c0_16, %c0_17], %13 {strides = array<i32>} : memref<8x1xf32, #tpu.memory_space<vmem>>, vector<8x1xf32>,
    %c0_i32_18 = arith.constant 0 : i32
    %26 = arith.cmpi eq, %arg0, %c0_i32_18 : i32
    %27 = arith.extui %26 : i1 to i32
    %c0_i32_19 = arith.constant 0 : i32
    %28 = arith.cmpi ne, %27, %c0_i32_19 : i32
    scf.if %28 {
      %c0_20 = arith.constant 0 : index
      %c0_21 = arith.constant 0 : index
      %29 = vector.load %arg11[%c0_20, %c0_21] : memref<8x1xf32, #tpu.memory_space<vmem>>, vector<8x1xf32>
      %c0_22 = arith.constant 0 : index
      %c0_23 = arith.constant 0 : index
      %30 = vector.load %arg12[%c0_22, %c0_23] : memref<8x1xf32, #tpu.memory_space<vmem>>, vector<8x1xf32>
      %31 = math.log %30 : vector<8x1xf32>
      %32 = arith.addf %29, %31 : vector<8x1xf32>
      %cst_24 = arith.constant 0.000000e+00 : f32
      %33 = vector.broadcast %cst_24 : f32 to vector<8x128xf32>
      %34 = vector.broadcast %32 : vector<8x1xf32> to vector<8x128xf32>
      %35 = arith.addf %34, %33 : vector<8x128xf32>
      %c0_25 = arith.constant 0 : index
      %c0_26 = arith.constant 0 : index
      %36 = vector.load %arg8[%c0_25, %c0_26] : memref<8x128xf32, #tpu.memory_space<vmem>>, vector<8x128xf32>
      tpu.vector_store %arg8[%c0_25, %c0_26], %35 {strides = array<i32>} : memref<8x128xf32, #tpu.memory_space<vmem>>, vector<8x128xf32>,
    } else {
    }
    return
  }
  func.func @transform_0(%arg0: i32) -> (i32, i32) {
    %c0_i32 = arith.constant 0 : i32
    %c0_i32_0 = arith.constant 0 : i32
    %c0_i32_1 = arith.constant 0 : i32
    return %c0_i32, %c0_i32_0 : i32, i32
  }
  func.func @transform_1(%arg0: i32) -> (i32, i32) {
    %c0_i32 = arith.constant 0 : i32
    %c0_i32_0 = arith.constant 0 : i32
    %c0_i32_1 = arith.constant 0 : i32
    return %c0_i32, %c0_i32_0 : i32, i32
  }
  func.func @transform_2(%arg0: i32) -> (i32, i32) {
    %c0_i32 = arith.constant 0 : i32
    %c0_i32_0 = arith.constant 0 : i32
    %c0_i32_1 = arith.constant 0 : i32
    return %c0_i32, %c0_i32_0 : i32, i32
  }
  func.func @transform_3(%arg0: i32) -> (i32, i32) {
    %c0_i32 = arith.constant 0 : i32
    %c0_i32_0 = arith.constant 0 : i32
    %c0_i32_1 = arith.constant 0 : i32
    return %c0_i32, %c0_i32_0 : i32, i32
  }
  func.func @transform_4(%arg0: i32) -> (i32, i32) {
    %c0_i32 = arith.constant 0 : i32
    %c0_i32_0 = arith.constant 0 : i32
    return %c0_i32, %arg0 : i32, i32
  }
  func.func @transform_5(%arg0: i32) -> (i32, i32) {
    %c0_i32 = arith.constant 0 : i32
    %c0_i32_0 = arith.constant 0 : i32
    return %c0_i32, %arg0 : i32, i32
  }
  func.func @transform_6(%arg0: i32) -> (i32, i32) {
    %c0_i32 = arith.constant 0 : i32
    %c0_i32_0 = arith.constant 0 : i32
    return %c0_i32, %arg0 : i32, i32
  }
  func.func @transform_7(%arg0: i32) -> (i32, i32) {
    %c0_i32 = arith.constant 0 : i32
    %c0_i32_0 = arith.constant 0 : i32
    %c0_i32_1 = arith.constant 0 : i32
    return %c0_i32, %c0_i32_0 : i32, i32
  }
  func.func @transform_8(%arg0: i32) -> (i32, i32) {
    %c0_i32 = arith.constant 0 : i32
    %c0_i32_0 = arith.constant 0 : i32
    %c0_i32_1 = arith.constant 0 : i32
    return %c0_i32, %c0_i32_0 : i32, i32
  }
}

</mosaic_0001>

<llo_original>
// kernel: tpu_custom_call.1
$region0: #{tpu_custom_call.1}
  #allocation0 [shape = 'u32[]', space=smem, size = 0x4, offset = 0x4, fixed_abs, tag = 'smem constant byte address 0x4 - core index']
  #allocation1 [shape = 'u32[72,128]{1,0:T(1,128)}', space=vmem, size = 0x9000, scoped, tag = 'internal scratch']
  #allocation2 [shape = 'bf16[8,128]{1,0:T(8,128)(2,1)}', space=vmem, size = 0x800, scoped, tag = 'scratch operand']
  #allocation3 [shape = 'f32[8,1]{1,0:T(8,128)}', space=vmem, size = 0x1000, scoped, tag = 'scratch operand']
  #allocation4 [shape = 'f32[8,1]{1,0:T(8,128)}', space=vmem, size = 0x1000, scoped, tag = 'scratch operand']
  %s0 = inlined_call_operand.vmem [shape: bf16[8,256], index: 0, kind: input, shape index: {}]
  %s1 = inlined_call_operand.hbm [shape: f32[8,128], index: 1, kind: input, shape index: {}, may-alias: {1,8}]
  %s2 = inlined_call_operand.hbm [shape: bf16[256,512], index: 2, kind: input, shape index: {}]
  %s3 = inlined_call_operand.vmem [shape: f32[1,512], index: 3, kind: input, shape index: {}]
  %s4 = inlined_call_operand.hbm [shape: bf16[128,128], index: 4, kind: input, shape index: {}]
  %s5 = inlined_call_operand.vmem [shape: f32[1,128], index: 5, kind: input, shape index: {}]
  %s6 = inlined_call_operand.hbm [shape: f32[8,128], index: 6, kind: output, shape index: {0}]
  %s7 = inlined_call_operand.hbm [shape: f32[8,128], index: 7, kind: output, shape index: {1}]
  %s8 = inlined_call_operand.hbm [shape: f32[8,128], index: 8, kind: output, shape index: {2}, may-alias: {1,8}]
  %9 = xla_tuple %s6, %s7, %s8
  %s10 = sld [smem:[#allocation0]]
  $region70: #{tpu_custom_call.1} parent=0
    _
  %s12 = ssub.s32 1, %s10
  %s13 = scalar_select 0, %s12, %s10
  $region1: #{tpu_custom_call.1} parent=0
    #allocation5 [shape = 'u8[4096]{0}', space=vmem, size = 0x1000, scoped, tag = 'input window, operand 1, single buffered']
    #allocation6 [shape = 's32[1]{0}', space=sflag, size = 0x4, scoped, tag = 'scoped memory for tpu_custom_call.1']
    #allocation7 [shape = 's32[1]{0}', space=sflag, size = 0x4, scoped, tag = 'scoped memory for tpu_custom_call.1']
    #allocation8 [shape = 'u8[262144]{0}', space=vmem, size = 0x40000, scoped, tag = 'input window, operand 2, single buffered']
    #allocation9 [shape = 's32[1]{0}', space=sflag, size = 0x4, scoped, tag = 'scoped memory for tpu_custom_call.1']
    #allocation10 [shape = 'u8[32768]{0}', space=vmem, size = 0x8000, scoped, tag = 'input window, operand 4, single buffered']
    #allocation11 [shape = 'u8[4096]{0}', space=vmem, size = 0x1000, scoped, tag = 'output window, operand 0, single buffered']
    #allocation12 [shape = 'u8[4096]{0}', space=vmem, size = 0x1000, scoped, tag = 'output window, operand 1, single buffered']
    #allocation13 [shape = 's32[1]{0}', space=sflag, size = 0x4, scoped, tag = 'scoped memory for tpu_custom_call.1']
    #allocation14 [shape = 'u8[4096]{0}', space=vmem, size = 0x1000, scoped, tag = 'output window, operand 2, single buffered']
    %14 = vsyncpa [#allocation6], 0
    %15 = vsyncpa [#allocation9], 0
    %16 = vsyncpa [#allocation7], 0
    %17 = vsyncpa [#allocation13], 0
    // Predicated region
    $region2: #{tpu_custom_call.1} parent=1 // pred_check
      _
    $region3: #{tpu_custom_call.1} parent=1 // pred_check_branch
      %19 = sbr.rel (0) target = $region5
    $region4: #{tpu_custom_call.1} parent=1 // pred_region
      _
    $region5: #{tpu_custom_call.1} parent=1 // pred_fallthru
      _
    // Predicated region
    $region6: #{tpu_custom_call.1} parent=1 // pred_check
      _
    $region7: #{tpu_custom_call.1} parent=1 // pred_check_branch
      %21 = sbr.rel (0) target = $region9
    $region8: #{tpu_custom_call.1} parent=1 // pred_region
      %23 = vsyncadd [#allocation6], 0
      %s25 = sshll.u32 %s1, 4
      %s26 = int_to_ptr.hbm [resolvable:$true] %s25
      %s27 = sshll.u32 [#allocation5], 4
      %s28 = int_to_ptr.vmem [resolvable:$true] %s27
      %30 = dma.hbm_to_vmem [thread:$0]  %s26, 128, %s28, [#allocation6]
    $region9: #{tpu_custom_call.1} parent=1 // pred_fallthru
      _
    // Predicated region
    $region10: #{tpu_custom_call.1} parent=1 // pred_check
      _
    $region11: #{tpu_custom_call.1} parent=1 // pred_check_branch
      %32 = sbr.rel (0) target = $region13
    $region12: #{tpu_custom_call.1} parent=1 // pred_region
      %34 = vsyncadd [#allocation9], 0
      %s35 = sshll.u32 %s2, 4
      %s36 = int_to_ptr.hbm [resolvable:$true] %s35
      %s37 = sshll.u32 [#allocation8], 4
      %s38 = int_to_ptr.vmem [resolvable:$true] %s37
      %43 = dma.hbm_to_vmem [thread:$0]  %s36, 8192, %s38, [#allocation9], 256, 256, 16
    $region13: #{tpu_custom_call.1} parent=1 // pred_fallthru
      _
    // Predicated region
    $region14: #{tpu_custom_call.1} parent=1 // pred_check
      _
    $region15: #{tpu_custom_call.1} parent=1 // pred_check_branch
      %45 = sbr.rel (0) target = $region17
    $region16: #{tpu_custom_call.1} parent=1 // pred_region
      _
    $region17: #{tpu_custom_call.1} parent=1 // pred_fallthru
      _
    // Predicated region
    $region18: #{tpu_custom_call.1} parent=1 // pred_check
      _
    $region19: #{tpu_custom_call.1} parent=1 // pred_check_branch
      %47 = sbr.rel (0) target = $region21
    $region20: #{tpu_custom_call.1} parent=1 // pred_region
      %49 = vsyncadd [#allocation9], 0
      %s50 = sshll.u32 %s4, 4
      %s51 = int_to_ptr.hbm [resolvable:$true] %s50
      %s52 = sshll.u32 [#allocation10], 4
      %s53 = int_to_ptr.vmem [resolvable:$true] %s52
      %58 = dma.hbm_to_vmem [thread:$0]  %s51, 1024, %s53, [#allocation9], 64, 64, 4
    $region21: #{tpu_custom_call.1} parent=1 // pred_fallthru
      _
    // Predicated region
    $region22: #{tpu_custom_call.1} parent=1 // pred_check
      _
    $region23: #{tpu_custom_call.1} parent=1 // pred_check_branch
      %60 = sbr.rel (0) target = $region25
    $region24: #{tpu_custom_call.1} parent=1 // pred_region
      _
    $region25: #{tpu_custom_call.1} parent=1 // pred_fallthru
      _
    // Predicated region
    $region26: #{tpu_custom_call.1} parent=1 // pred_check
      _
    $region27: #{tpu_custom_call.1} parent=1 // pred_check_branch
      %62 = sbr.rel (0) target = $region29
    $region28: #{tpu_custom_call.1} parent=1 // pred_region
      %64 = dma.done [#allocation6], 128
    $region29: #{tpu_custom_call.1} parent=1 // pred_fallthru
      _
    // Predicated region
    $region30: #{tpu_custom_call.1} parent=1 // pred_check
      _
    $region31: #{tpu_custom_call.1} parent=1 // pred_check_branch
      %66 = sbr.rel (0) target = $region33
    $region32: #{tpu_custom_call.1} parent=1 // pred_region
      %68 = dma.done [#allocation9], 8192
    $region33: #{tpu_custom_call.1} parent=1 // pred_fallthru
      _
    // Predicated region
    $region34: #{tpu_custom_call.1} parent=1 // pred_check
      _
    $region35: #{tpu_custom_call.1} parent=1 // pred_check_branch
      %70 = sbr.rel (0) target = $region37
    $region36: #{tpu_custom_call.1} parent=1 // pred_region
      %72 = dma.done [#allocation9], 1024
    $region37: #{tpu_custom_call.1} parent=1 // pred_fallthru
      _
    %p73 = scmp.eq.s32.totalorder 0, 0
    // Predicated region
    $region38: #{tpu_custom_call.1} parent=1 // pred_check
      %p74 = pneg %p73
    $region39: #{tpu_custom_call.1} parent=1 // pred_check_branch
      %76 = sbr.rel (%p74) target = $region41
    $region40: #{tpu_custom_call.1} parent=1 // pred_region
      %v77 = vld [vmem:[#allocation5] sm:$0xff]
      %v78 = vld [vmem:[%s0] sm:$0xff]
      %v79 = vld [vmem:[#allocation8] sm:$0xff]
      %v80 = vld [vmem:[#allocation8 + $0x8] sm:$0xff]
      %v81 = vld [vmem:[#allocation8 + $0x10] sm:$0xff]
      %v82 = vld [vmem:[#allocation8 + $0x18] sm:$0xff]
      %v83 = vld [vmem:[#allocation8 + $0x20] sm:$0xff]
      %v84 = vld [vmem:[#allocation8 + $0x28] sm:$0xff]
      %v85 = vld [vmem:[#allocation8 + $0x30] sm:$0xff]
      %v86 = vld [vmem:[#allocation8 + $0x38] sm:$0xff]
      %v87 = vld [vmem:[#allocation8 + $0x40] sm:$0xff]
      %v88 = vld [vmem:[#allocation8 + $0x48] sm:$0xff]
      %v89 = vld [vmem:[#allocation8 + $0x50] sm:$0xff]
      %v90 = vld [vmem:[#allocation8 + $0x58] sm:$0xff]
      %v91 = vld [vmem:[#allocation8 + $0x60] sm:$0xff]
      %v92 = vld [vmem:[#allocation8 + $0x68] sm:$0xff]
      %v93 = vld [vmem:[#allocation8 + $0x70] sm:$0xff]
      %v94 = vld [vmem:[#allocation8 + $0x78] sm:$0xff]
      %v95 = vld [vmem:[#allocation8 + $0x80] sm:$0xff]
      %v96 = vld [vmem:[#allocation8 + $0x88] sm:$0xff]
      %v97 = vld [vmem:[#allocation8 + $0x90] sm:$0xff]
      %v98 = vld [vmem:[#allocation8 + $0x98] sm:$0xff]
      %v99 = vld [vmem:[#allocation8 + $0xa0] sm:$0xff]
      %v100 = vld [vmem:[#allocation8 + $0xa8] sm:$0xff]
      %v101 = vld [vmem:[#allocation8 + $0xb0] sm:$0xff]
      %v102 = vld [vmem:[#allocation8 + $0xb8] sm:$0xff]
      %v103 = vld [vmem:[#allocation8 + $0xc0] sm:$0xff]
      %v104 = vld [vmem:[#allocation8 + $0xc8] sm:$0xff]
      %v105 = vld [vmem:[#allocation8 + $0xd0] sm:$0xff]
      %v106 = vld [vmem:[#allocation8 + $0xd8] sm:$0xff]
      %v107 = vld [vmem:[#allocation8 + $0xe0] sm:$0xff]
      %v108 = vld [vmem:[#allocation8 + $0xe8] sm:$0xff]
      %v109 = vld [vmem:[#allocation8 + $0xf0] sm:$0xff]
      %v110 = vld [vmem:[#allocation8 + $0xf8] sm:$0xff]
      %v111 = vld [vmem:[#allocation8 + $0x100] sm:$0xff]
      %v112 = vld [vmem:[#allocation8 + $0x108] sm:$0xff]
      %v113 = vld [vmem:[#allocation8 + $0x110] sm:$0xff]
      %v114 = vld [vmem:[#allocation8 + $0x118] sm:$0xff]
      %v115 = vld [vmem:[#allocation8 + $0x120] sm:$0xff]
      %v116 = vld [vmem:[#allocation8 + $0x128] sm:$0xff]
      %v117 = vld [vmem:[#allocation8 + $0x130] sm:$0xff]
      %v118 = vld [vmem:[#allocation8 + $0x138] sm:$0xff]
      %v119 = vld [vmem:[#allocation8 + $0x140] sm:$0xff]
      %v120 = vld [vmem:[#allocation8 + $0x148] sm:$0xff]
      %v121 = vld [vmem:[#allocation8 + $0x150] sm:$0xff]
      %v122 = vld [vmem:[#allocation8 + $0x158] sm:$0xff]
      %v123 = vld [vmem:[#allocation8 + $0x160] sm:$0xff]
      %v124 = vld [vmem:[#allocation8 + $0x168] sm:$0xff]
      %v125 = vld [vmem:[#allocation8 + $0x170] sm:$0xff]
      %v126 = vld [vmem:[#allocation8 + $0x178] sm:$0xff]
      %v127 = vld [vmem:[#allocation8 + $0x180] sm:$0xff]
      %v128 = vld [vmem:[#allocation8 + $0x188] sm:$0xff]
      %v129 = vld [vmem:[#allocation8 + $0x190] sm:$0xff]
      %v130 = vld [vmem:[#allocation8 + $0x198] sm:$0xff]
      %v131 = vld [vmem:[#allocation8 + $0x1a0] sm:$0xff]
      %v132 = vld [vmem:[#allocation8 + $0x1a8] sm:$0xff]
      %v133 = vld [vmem:[#allocation8 + $0x1b0] sm:$0xff]
      %v134 = vld [vmem:[#allocation8 + $0x1b8] sm:$0xff]
      %v135 = vld [vmem:[#allocation8 + $0x1c0] sm:$0xff]
      %v136 = vld [vmem:[#allocation8 + $0x1c8] sm:$0xff]
      %v137 = vld [vmem:[#allocation8 + $0x1d0] sm:$0xff]
      %v138 = vld [vmem:[#allocation8 + $0x1d8] sm:$0xff]
      %v139 = vld [vmem:[#allocation8 + $0x1e0] sm:$0xff]
      %v140 = vld [vmem:[#allocation8 + $0x1e8] sm:$0xff]
      %v141 = vld [vmem:[#allocation8 + $0x1f0] sm:$0xff]
      %v142 = vld [vmem:[#allocation8 + $0x1f8] sm:$0xff]
      %v143 = vld [vmem:[%s3] sm:$0xf]
      %v145 = vperm.slane %v143, 0
      %v146 = vperm.slane %v143, 1
      %v147 = vperm.slane %v143, 2
      %v148 = vperm.slane %v143, 3
      %v154 = vunpack.c.l.b16 %v78
      %v155 = vunpack.c.h.b16 %v78
      %v156 = vpack.c.b16 %v154, %v154
      %v157 = vpack.c.b16 %v155, %v155
      %v224 = vunpack.c.l.b16 %v79
      %v225 = vunpack.c.h.b16 %v79
      %v226 = vunpack.c.l.b16 %v80
      %v227 = vunpack.c.h.b16 %v80
      %v228 = vunpack.c.l.b16 %v81
      %v229 = vunpack.c.h.b16 %v81
      %v230 = vunpack.c.l.b16 %v82
      %v231 = vunpack.c.h.b16 %v82
      %v232 = vunpack.c.l.b16 %v83
      %v233 = vunpack.c.h.b16 %v83
      %v234 = vunpack.c.l.b16 %v84
      %v235 = vunpack.c.h.b16 %v84
      %v236 = vunpack.c.l.b16 %v85
      %v237 = vunpack.c.h.b16 %v85
      %v238 = vunpack.c.l.b16 %v86
      %v239 = vunpack.c.h.b16 %v86
      %v240 = vunpack.c.l.b16 %v87
      %v241 = vunpack.c.h.b16 %v87
      %v242 = vunpack.c.l.b16 %v88
      %v243 = vunpack.c.h.b16 %v88
      %v244 = vunpack.c.l.b16 %v89
      %v245 = vunpack.c.h.b16 %v89
      %v246 = vunpack.c.l.b16 %v90
      %v247 = vunpack.c.h.b16 %v90
      %v248 = vunpack.c.l.b16 %v91
      %v249 = vunpack.c.h.b16 %v91
      %v250 = vunpack.c.l.b16 %v92
      %v251 = vunpack.c.h.b16 %v92
      %v252 = vunpack.c.l.b16 %v93
      %v253 = vunpack.c.h.b16 %v93
      %v254 = vunpack.c.l.b16 %v94
      %v255 = vunpack.c.h.b16 %v94
      %v256 = vunpack.c.l.b16 %v95
      %v257 = vunpack.c.h.b16 %v95
      %v258 = vunpack.c.l.b16 %v96
      %v259 = vunpack.c.h.b16 %v96
      %v260 = vunpack.c.l.b16 %v97
      %v261 = vunpack.c.h.b16 %v97
      %v262 = vunpack.c.l.b16 %v98
      %v263 = vunpack.c.h.b16 %v98
      %v264 = vunpack.c.l.b16 %v99
      %v265 = vunpack.c.h.b16 %v99
      %v266 = vunpack.c.l.b16 %v100
      %v267 = vunpack.c.h.b16 %v100
      %v268 = vunpack.c.l.b16 %v101
      %v269 = vunpack.c.h.b16 %v101
      %v270 = vunpack.c.l.b16 %v102
      %v271 = vunpack.c.h.b16 %v102
      %v272 = vunpack.c.l.b16 %v103
      %v273 = vunpack.c.h.b16 %v103
      %v274 = vunpack.c.l.b16 %v104
      %v275 = vunpack.c.h.b16 %v104
      %v276 = vunpack.c.l.b16 %v105
      %v277 = vunpack.c.h.b16 %v105
      %v278 = vunpack.c.l.b16 %v106
      %v279 = vunpack.c.h.b16 %v106
      %v280 = vunpack.c.l.b16 %v107
      %v281 = vunpack.c.h.b16 %v107
      %v282 = vunpack.c.l.b16 %v108
      %v283 = vunpack.c.h.b16 %v108
      %v284 = vunpack.c.l.b16 %v109
      %v285 = vunpack.c.h.b16 %v109
      %v286 = vunpack.c.l.b16 %v110
      %v287 = vunpack.c.h.b16 %v110
      %v288 = vunpack.c.l.b16 %v111
      %v289 = vunpack.c.h.b16 %v111
      %v290 = vunpack.c.l.b16 %v112
      %v291 = vunpack.c.h.b16 %v112
      %v292 = vunpack.c.l.b16 %v113
      %v293 = vunpack.c.h.b16 %v113
      %v294 = vunpack.c.l.b16 %v114
      %v295 = vunpack.c.h.b16 %v114
      %v296 = vunpack.c.l.b16 %v115
      %v297 = vunpack.c.h.b16 %v115
      %v298 = vunpack.c.l.b16 %v116
      %v299 = vunpack.c.h.b16 %v116
      %v300 = vunpack.c.l.b16 %v117
      %v301 = vunpack.c.h.b16 %v117
      %v302 = vunpack.c.l.b16 %v118
      %v303 = vunpack.c.h.b16 %v118
      %v304 = vunpack.c.l.b16 %v119
      %v305 = vunpack.c.h.b16 %v119
      %v306 = vunpack.c.l.b16 %v120
      %v307 = vunpack.c.h.b16 %v120
      %v308 = vunpack.c.l.b16 %v121
      %v309 = vunpack.c.h.b16 %v121
      %v310 = vunpack.c.l.b16 %v122
      %v311 = vunpack.c.h.b16 %v122
      %v312 = vunpack.c.l.b16 %v123
      %v313 = vunpack.c.h.b16 %v123
      %v314 = vunpack.c.l.b16 %v124
      %v315 = vunpack.c.h.b16 %v124
      %v316 = vunpack.c.l.b16 %v125
      %v317 = vunpack.c.h.b16 %v125
      %v318 = vunpack.c.l.b16 %v126
      %v319 = vunpack.c.h.b16 %v126
      %v320 = vunpack.c.l.b16 %v127
      %v321 = vunpack.c.h.b16 %v127
      %v322 = vunpack.c.l.b16 %v128
      %v323 = vunpack.c.h.b16 %v128
      %v324 = vunpack.c.l.b16 %v129
      %v325 = vunpack.c.h.b16 %v129
      %v326 = vunpack.c.l.b16 %v130
      %v327 = vunpack.c.h.b16 %v130
      %v328 = vunpack.c.l.b16 %v131
      %v329 = vunpack.c.h.b16 %v131
      %v330 = vunpack.c.l.b16 %v132
      %v331 = vunpack.c.h.b16 %v132
      %v332 = vunpack.c.l.b16 %v133
      %v333 = vunpack.c.h.b16 %v133
      %v334 = vunpack.c.l.b16 %v134
      %v335 = vunpack.c.h.b16 %v134
      %v336 = vunpack.c.l.b16 %v135
      %v337 = vunpack.c.h.b16 %v135
      %v338 = vunpack.c.l.b16 %v136
      %v339 = vunpack.c.h.b16 %v136
      %v340 = vunpack.c.l.b16 %v137
      %v341 = vunpack.c.h.b16 %v137
      %v342 = vunpack.c.l.b16 %v138
      %v343 = vunpack.c.h.b16 %v138
      %v344 = vunpack.c.l.b16 %v139
      %v345 = vunpack.c.h.b16 %v139
      %v346 = vunpack.c.l.b16 %v140
      %v347 = vunpack.c.h.b16 %v140
      %v348 = vunpack.c.l.b16 %v141
      %v349 = vunpack.c.h.b16 %v141
      %v350 = vunpack.c.l.b16 %v142
      %v351 = vunpack.c.h.b16 %v142
      %v352 = vpack.c.b16 %v228, %v224
      %v353 = vpack.c.b16 %v229, %v225
      %v354 = vpack.c.b16 %v230, %v226
      %v355 = vpack.c.b16 %v231, %v227
      %v356 = vpack.c.b16 %v236, %v232
      %v357 = vpack.c.b16 %v237, %v233
      %v358 = vpack.c.b16 %v238, %v234
      %v359 = vpack.c.b16 %v239, %v235
      %v360 = vpack.c.b16 %v244, %v240
      %v361 = vpack.c.b16 %v245, %v241
      %v362 = vpack.c.b16 %v246, %v242
      %v363 = vpack.c.b16 %v247, %v243
      %v364 = vpack.c.b16 %v252, %v248
      %v365 = vpack.c.b16 %v253, %v249
      %v366 = vpack.c.b16 %v254, %v250
      %v367 = vpack.c.b16 %v255, %v251
      %v368 = vpack.c.b16 %v260, %v256
      %v369 = vpack.c.b16 %v261, %v257
      %v370 = vpack.c.b16 %v262, %v258
      %v371 = vpack.c.b16 %v263, %v259
      %v372 = vpack.c.b16 %v268, %v264
      %v373 = vpack.c.b16 %v269, %v265
      %v374 = vpack.c.b16 %v270, %v266
      %v375 = vpack.c.b16 %v271, %v267
      %v376 = vpack.c.b16 %v276, %v272
      %v377 = vpack.c.b16 %v277, %v273
      %v378 = vpack.c.b16 %v278, %v274
      %v379 = vpack.c.b16 %v279, %v275
      %v380 = vpack.c.b16 %v284, %v280
      %v381 = vpack.c.b16 %v285, %v281
      %v382 = vpack.c.b16 %v286, %v282
      %v383 = vpack.c.b16 %v287, %v283
      %v384 = vpack.c.b16 %v292, %v288
      %v385 = vpack.c.b16 %v293, %v289
      %v386 = vpack.c.b16 %v294, %v290
      %v387 = vpack.c.b16 %v295, %v291
      %v388 = vpack.c.b16 %v300, %v296
      %v389 = vpack.c.b16 %v301, %v297
      %v390 = vpack.c.b16 %v302, %v298
      %v391 = vpack.c.b16 %v303, %v299
      %v392 = vpack.c.b16 %v308, %v304
      %v393 = vpack.c.b16 %v309, %v305
      %v394 = vpack.c.b16 %v310, %v306
      %v395 = vpack.c.b16 %v311, %v307
      %v396 = vpack.c.b16 %v316, %v312
      %v397 = vpack.c.b16 %v317, %v313
      %v398 = vpack.c.b16 %v318, %v314
      %v399 = vpack.c.b16 %v319, %v315
      %v400 = vpack.c.b16 %v324, %v320
      %v401 = vpack.c.b16 %v325, %v321
      %v402 = vpack.c.b16 %v326, %v322
      %v403 = vpack.c.b16 %v327, %v323
      %v404 = vpack.c.b16 %v332, %v328
      %v405 = vpack.c.b16 %v333, %v329
      %v406 = vpack.c.b16 %v334, %v330
      %v407 = vpack.c.b16 %v335, %v331
      %v408 = vpack.c.b16 %v340, %v336
      %v409 = vpack.c.b16 %v341, %v337
      %v410 = vpack.c.b16 %v342, %v338
      %v411 = vpack.c.b16 %v343, %v339
      %v412 = vpack.c.b16 %v348, %v344
      %v413 = vpack.c.b16 %v349, %v345
      %v414 = vpack.c.b16 %v350, %v346
      %v415 = vpack.c.b16 %v351, %v347
      %480 = vmatpush.bf16.msra.mxu0 %v380
      %481 = vmatpush.bf16.msra.mxu0 %v376
      %482 = vmatpush.bf16.msra.mxu0 %v372
      %483 = vmatpush.bf16.msra.mxu0 %v368
      %484 = vmatpush.bf16.msra.mxu0 %v364
      %485 = vmatpush.bf16.msra.mxu0 %v360
      %486 = vmatpush.bf16.msra.mxu0 %v356
      %487 = vmatpush.bf16.msra.mxu0 %v352
      %488 = vmatmul.bf16.gmra.mxu0 %v156
      %v489 = vpop.f32.mrf.mxu0
      %v490 = vadd.f32 %v145, %v489
      %v491 = vpop.f32.mrf.mxu0
      %492 = vdwg.mxu0
      %493 = vmatpush.bf16.msra.mxu0 %v412
      %494 = vmatpush.bf16.msra.mxu0 %v408
      %495 = vmatpush.bf16.msra.mxu0 %v404
      %496 = vmatpush.bf16.msra.mxu0 %v400
      %497 = vmatpush.bf16.msra.mxu0 %v396
      %498 = vmatpush.bf16.msra.mxu0 %v392
      %499 = vmatpush.bf16.msra.mxu0 %v388
      %500 = vmatpush.bf16.msra.mxu0 %v384
      %501 = vmatmul.bf16.gmra.mxu0 %v157
      %v502 = vpop.f32.mrf.mxu0
      %v503 = vadd.f32 %v490, %v502
      %v504 = vpop.f32.mrf.mxu0
      %505 = vdwg.mxu0
      %506 = vmatpush.bf16.msra.mxu0 %v381
      %507 = vmatpush.bf16.msra.mxu0 %v377
      %508 = vmatpush.bf16.msra.mxu0 %v373
      %509 = vmatpush.bf16.msra.mxu0 %v369
      %510 = vmatpush.bf16.msra.mxu0 %v365
      %511 = vmatpush.bf16.msra.mxu0 %v361
      %512 = vmatpush.bf16.msra.mxu0 %v357
      %513 = vmatpush.bf16.msra.mxu0 %v353
      %514 = vmatmul.bf16.gmra.mxu0 %v156
      %v515 = vpop.f32.mrf.mxu0
      %v516 = vadd.f32 %v146, %v515
      %v517 = vpop.f32.mrf.mxu0
      %518 = vdwg.mxu0
      %519 = vmatpush.bf16.msra.mxu0 %v413
      %520 = vmatpush.bf16.msra.mxu0 %v409
      %521 = vmatpush.bf16.msra.mxu0 %v405
      %522 = vmatpush.bf16.msra.mxu0 %v401
      %523 = vmatpush.bf16.msra.mxu0 %v397
      %524 = vmatpush.bf16.msra.mxu0 %v393
      %525 = vmatpush.bf16.msra.mxu0 %v389
      %526 = vmatpush.bf16.msra.mxu0 %v385
      %527 = vmatmul.bf16.gmra.mxu0 %v157
      %v528 = vpop.f32.mrf.mxu0
      %v529 = vadd.f32 %v516, %v528
      %v530 = vpop.f32.mrf.mxu0
      %531 = vdwg.mxu0
      %532 = vmatpush.bf16.msra.mxu0 %v382
      %533 = vmatpush.bf16.msra.mxu0 %v378
      %534 = vmatpush.bf16.msra.mxu0 %v374
      %535 = vmatpush.bf16.msra.mxu0 %v370
      %536 = vmatpush.bf16.msra.mxu0 %v366
      %537 = vmatpush.bf16.msra.mxu0 %v362
      %538 = vmatpush.bf16.msra.mxu0 %v358
      %539 = vmatpush.bf16.msra.mxu0 %v354
      %540 = vmatmul.bf16.gmra.mxu0 %v156
      %v541 = vpop.f32.mrf.mxu0
      %v542 = vadd.f32 %v147, %v541
      %v543 = vpop.f32.mrf.mxu0
      %544 = vdwg.mxu0
      %545 = vmatpush.bf16.msra.mxu0 %v414
      %546 = vmatpush.bf16.msra.mxu0 %v410
      %547 = vmatpush.bf16.msra.mxu0 %v406
      %548 = vmatpush.bf16.msra.mxu0 %v402
      %549 = vmatpush.bf16.msra.mxu0 %v398
      %550 = vmatpush.bf16.msra.mxu0 %v394
      %551 = vmatpush.bf16.msra.mxu0 %v390
      %552 = vmatpush.bf16.msra.mxu0 %v386
      %553 = vmatmul.bf16.gmra.mxu0 %v157
      %v554 = vpop.f32.mrf.mxu0
      %v555 = vadd.f32 %v542, %v554
      %v556 = vpop.f32.mrf.mxu0
      %557 = vdwg.mxu0
      %558 = vmatpush.bf16.msra.mxu0 %v383
      %559 = vmatpush.bf16.msra.mxu0 %v379
      %560 = vmatpush.bf16.msra.mxu0 %v375
      %561 = vmatpush.bf16.msra.mxu0 %v371
      %562 = vmatpush.bf16.msra.mxu0 %v367
      %563 = vmatpush.bf16.msra.mxu0 %v363
      %564 = vmatpush.bf16.msra.mxu0 %v359
      %565 = vmatpush.bf16.msra.mxu0 %v355
      %566 = vmatmul.bf16.gmra.mxu0 %v156
      %v567 = vpop.f32.mrf.mxu0
      %v568 = vadd.f32 %v148, %v567
      %v569 = vpop.f32.mrf.mxu0
      %570 = vdwg.mxu0
      %571 = vmatpush.bf16.msra.mxu0 %v415
      %572 = vmatpush.bf16.msra.mxu0 %v411
      %573 = vmatpush.bf16.msra.mxu0 %v407
      %574 = vmatpush.bf16.msra.mxu0 %v403
      %575 = vmatpush.bf16.msra.mxu0 %v399
      %576 = vmatpush.bf16.msra.mxu0 %v395
      %577 = vmatpush.bf16.msra.mxu0 %v391
      %578 = vmatpush.bf16.msra.mxu0 %v387
      %579 = vmatmul.bf16.gmra.mxu0 %v157
      %v580 = vpop.f32.mrf.mxu0
      %v581 = vadd.f32 %v568, %v580
      %v582 = vpop.f32.mrf.mxu0
      %583 = vdwg.mxu0
      %v584 = vxor.u32 %v503, 2147483648
      %v585 = vmul.f32 %v584, 1.442695
      %v586 = vpow.pop %v585
      %v587 = vadd.f32 %v586, 1.0
      %v588 = vrcp.pop %v587
      %v589 = vmul.f32 %v587, %v588
      %v590 = vsub.f32 1.0, %v589
      %v591 = vmul.f32 %v588, %v590
      %v592 = vadd.f32 %v588, %v591
      %vm593 = vweird.f32 %v587
      %vm594 = vweird.f32 %v588
      %vm595 = vmor %vm593, %vm594
      %v596 = vsel %vm595, %v588, %v592
      %v597 = vand.u32 2147483647, %v587
      %vm598 = vcmp.eq.f32.partialorder %v597, 8.507059e+37
      %v599 = vand.u32 %v587, 2147483648
      %v600 = vor.u32 1.1754944e-38, %v599
      %v601 = vsel %vm598, %v600, %v596
      %v602 = vmul.f32 1.0, %v601
      %v603 = vxor.u32 %v529, 2147483648
      %v604 = vmul.f32 %v603, 1.442695
      %v605 = vpow.pop %v604
      %v606 = vadd.f32 %v605, 1.0
      %v607 = vrcp.pop %v606
      %v608 = vmul.f32 %v606, %v607
      %v609 = vsub.f32 1.0, %v608
      %v610 = vmul.f32 %v607, %v609
      %v611 = vadd.f32 %v607, %v610
      %vm612 = vweird.f32 %v606
      %vm613 = vweird.f32 %v607
      %vm614 = vmor %vm612, %vm613
      %v615 = vsel %vm614, %v607, %v611
      %v616 = vand.u32 2147483647, %v606
      %vm617 = vcmp.eq.f32.partialorder %v616, 8.507059e+37
      %v618 = vand.u32 %v606, 2147483648
      %v619 = vor.u32 1.1754944e-38, %v618
      %v620 = vsel %vm617, %v619, %v615
      %v621 = vmul.f32 1.0, %v620
      %v622 = vtanh.pop %v555
      %v623 = vxor.u32 %v581, 2147483648
      %v624 = vmul.f32 %v623, 1.442695
      %v625 = vpow.pop %v624
      %v626 = vadd.f32 %v625, 1.0
      %v627 = vrcp.pop %v626
      %v628 = vmul.f32 %v626, %v627
      %v629 = vsub.f32 1.0, %v628
      %v630 = vmul.f32 %v627, %v629
      %v631 = vadd.f32 %v627, %v630
      %vm632 = vweird.f32 %v626
      %vm633 = vweird.f32 %v627
      %vm634 = vmor %vm632, %vm633
      %v635 = vsel %vm634, %v627, %v631
      %v636 = vand.u32 2147483647, %v626
      %vm637 = vcmp.eq.f32.partialorder %v636, 8.507059e+37
      %v638 = vand.u32 %v626, 2147483648
      %v639 = vor.u32 1.1754944e-38, %v638
      %v640 = vsel %vm637, %v639, %v635
      %v641 = vmul.f32 1.0, %v640
      %v642 = vmul.f32 %v621, %v77
      %v643 = vmul.f32 %v602, %v622
      %v644 = vadd.f32 %v642, %v643
      %v645 = vtanh.pop %v644
      %v646 = vmul.f32 %v641, %v645
      %647 = vst [vmem:[#allocation14] sm:$0xff] %v644
      %v648 = vpack.c.bf16 %v646, %v646
      %649 = vst [vmem:[#allocation2] sm:$0xf] %v648
      %vm650 = vcmask 7168
      %651 = vst.msk [vmem:[#allocation3] sm:$0xff] %vm650, -1e+30
      %652 = vst.msk [vmem:[#allocation4] sm:$0xff] %vm650, 0.0
    $region41: #{tpu_custom_call.1} parent=1 // pred_fallthru
      _
    %v653 = vld [vmem:[#allocation2] sm:$0xf]
    %v654 = vld [vmem:[#allocation10] sm:$0xf]
    %v655 = vld [vmem:[#allocation10 + $0x4] sm:$0xf]
    %v656 = vld [vmem:[#allocation10 + $0x8] sm:$0xf]
    %v657 = vld [vmem:[#allocation10 + $0xc] sm:$0xf]
    %v658 = vld [vmem:[#allocation10 + $0x10] sm:$0xf]
    %v659 = vld [vmem:[#allocation10 + $0x14] sm:$0xf]
    %v660 = vld [vmem:[#allocation10 + $0x18] sm:$0xf]
    %v661 = vld [vmem:[#allocation10 + $0x1c] sm:$0xf]
    %v662 = vld [vmem:[#allocation10 + $0x20] sm:$0xf]
    %v663 = vld [vmem:[#allocation10 + $0x24] sm:$0xf]
    %v664 = vld [vmem:[#allocation10 + $0x28] sm:$0xf]
    %v665 = vld [vmem:[#allocation10 + $0x2c] sm:$0xf]
    %v666 = vld [vmem:[#allocation10 + $0x30] sm:$0xf]
    %v667 = vld [vmem:[#allocation10 + $0x34] sm:$0xf]
    %v668 = vld [vmem:[#allocation10 + $0x38] sm:$0xf]
    %v669 = vld [vmem:[#allocation10 + $0x3c] sm:$0xf]
    %v670 = vld [vmem:[%s5] sm:$0x1]
    %v672 = vperm.slane %v670, 0
    %v690 = vunpack.c.l.b16 %v654
    %v691 = vunpack.c.l.b16 %v655
    %v692 = vunpack.c.l.b16 %v656
    %v693 = vunpack.c.l.b16 %v657
    %v694 = vunpack.c.l.b16 %v658
    %v695 = vunpack.c.l.b16 %v659
    %v696 = vunpack.c.l.b16 %v660
    %v697 = vunpack.c.l.b16 %v661
    %v698 = vunpack.c.l.b16 %v662
    %v699 = vunpack.c.l.b16 %v663
    %v700 = vunpack.c.l.b16 %v664
    %v701 = vunpack.c.l.b16 %v665
    %v702 = vunpack.c.l.b16 %v666
    %v703 = vunpack.c.l.b16 %v667
    %v704 = vunpack.c.l.b16 %v668
    %v705 = vunpack.c.l.b16 %v669
    %v706 = vpack.c.b16 %v691, %v690
    %v707 = vpack.c.b16 %v693, %v692
    %v708 = vpack.c.b16 %v695, %v694
    %v709 = vpack.c.b16 %v697, %v696
    %v710 = vpack.c.b16 %v699, %v698
    %v711 = vpack.c.b16 %v701, %v700
    %v712 = vpack.c.b16 %v703, %v702
    %v713 = vpack.c.b16 %v705, %v704
    %722 = vmatpush.bf16.msra.mxu0 %v713
    %723 = vmatpush.bf16.msra.mxu0 %v712
    %724 = vmatpush.bf16.msra.mxu0 %v711
    %725 = vmatpush.bf16.msra.mxu0 %v710
    %726 = vmatpush.bf16.msra.mxu0 %v709
    %727 = vmatpush.bf16.msra.mxu0 %v708
    %728 = vmatpush.bf16.msra.mxu0 %v707
    %729 = vmatpush.bf16.msra.mxu0 %v706
    %730 = vmatmul.bf16.gmra.mxu0 %v653
    %v731 = vpop.f32.mrf.mxu0
    %v732 = vadd.f32 %v672, %v731
    %v733 = vpop.f32.mrf.mxu0
    %734 = vdwg.mxu0
    %735 = vst [vmem:[#allocation11] sm:$0xff] %v732
    %v736 = vld [vmem:[#allocation3] sm:$0xff]
    %737 = vmax.xlane.f32.xlu0 %v732
    %v738 = vpop.xlane.xlu0 %737
    %v739 = vmax.f32 %v736, %v738
    %v740 = vld [vmem:[#allocation4] sm:$0xff]
    %v741 = vsub.f32 %v736, %v739
    %v742 = vmul.f32 %v741, 1.442695
    %v743 = vpow.pop %v742
    %v744 = vmul.f32 %v740, %v743
    %746 = vset.pattern.permute.xlu0 0
    %747 = vperm.xlu0 %746, %v739
    %v748 = vpop.permute.xlu0 %747
    %v750 = vsub.f32 %v732, %v748
    %v751 = vmul.f32 %v750, 1.442695
    %v752 = vpow.pop %v751
    %753 = vadd.xlane.f32.xlu0 %v752
    %v754 = vpop.xlane.xlu0 %753
    %v755 = vadd.f32 %v744, %v754
    %vm756 = vcmask 7168
    %757 = vst.msk [vmem:[#allocation4] sm:$0xff] %vm756, %v755
    %758 = vst.msk [vmem:[#allocation3] sm:$0xff] %vm756, %v739
    // Predicated region
    $region42: #{tpu_custom_call.1} parent=1 // pred_check
      %p759 = pneg %p73
    $region43: #{tpu_custom_call.1} parent=1 // pred_check_branch
      %761 = sbr.rel (%p759) target = $region45
    $region44: #{tpu_custom_call.1} parent=1 // pred_region
      %v762 = vld [vmem:[#allocation3] sm:$0xff]
      %v763 = vld [vmem:[#allocation4] sm:$0xff]
      %v764 = vlog2.pop %v763
      %v765 = vmul.f32 %v764, 0.6931472
      %v766 = vadd.f32 %v762, %v765
      %768 = vset.pattern.permute.xlu0 0
      %769 = vperm.xlu0 %768, %v766
      %v770 = vpop.permute.xlu0 %769
      %v772 = vadd.f32 %v770, 0.0
      %773 = vst [vmem:[#allocation12] sm:$0xff] %v772
    $region45: #{tpu_custom_call.1} parent=1 // pred_fallthru
      _
    // Predicated region
    $region46: #{tpu_custom_call.1} parent=1 // pred_check
      _
    $region47: #{tpu_custom_call.1} parent=1 // pred_check_branch
      %775 = sbr.rel (0) target = $region49
    $region48: #{tpu_custom_call.1} parent=1 // pred_region
      %777 = vsyncadd [#allocation7], 0
      %s779 = sshll.u32 [#allocation11], 4
      %s780 = int_to_ptr.vmem [resolvable:$true] %s779
      %s781 = sshll.u32 %s6, 4
      %s782 = int_to_ptr.hbm [resolvable:$true] %s781
      %784 = dma.vmem_to_hbm [thread:$0]  %s780, 128, %s782, [#allocation7]
    $region49: #{tpu_custom_call.1} parent=1 // pred_fallthru
      _
    // Predicated region
    $region50: #{tpu_custom_call.1} parent=1 // pred_check
      _
    $region51: #{tpu_custom_call.1} parent=1 // pred_check_branch
      %786 = sbr.rel (0) target = $region53
    $region52: #{tpu_custom_call.1} parent=1 // pred_region
      %788 = vsyncadd [#allocation13], 0
      %s790 = sshll.u32 [#allocation12], 4
      %s791 = int_to_ptr.vmem [resolvable:$true] %s790
      %s792 = sshll.u32 %s7, 4
      %s793 = int_to_ptr.hbm [resolvable:$true] %s792
      %795 = dma.vmem_to_hbm [thread:$0]  %s791, 128, %s793, [#allocation13]
    $region53: #{tpu_custom_call.1} parent=1 // pred_fallthru
      _
    // Predicated region
    $region54: #{tpu_custom_call.1} parent=1 // pred_check
      _
    $region55: #{tpu_custom_call.1} parent=1 // pred_check_branch
      %797 = sbr.rel (0) target = $region57
    $region56: #{tpu_custom_call.1} parent=1 // pred_region
      %799 = vsyncadd [#allocation13], 0
      %s801 = sshll.u32 [#allocation14], 4
      %s802 = int_to_ptr.vmem [resolvable:$true] %s801
      %s803 = sshll.u32 %s8, 4
      %s804 = int_to_ptr.hbm [resolvable:$true] %s803
      %806 = dma.vmem_to_hbm [thread:$0]  %s802, 128, %s804, [#allocation13]
    $region57: #{tpu_custom_call.1} parent=1 // pred_fallthru
      _
    // Predicated region
    $region58: #{tpu_custom_call.1} parent=1 // pred_check
      _
    $region59: #{tpu_custom_call.1} parent=1 // pred_check_branch
      %808 = sbr.rel (0) target = $region61
    $region60: #{tpu_custom_call.1} parent=1 // pred_region
      %810 = dma.done [#allocation7], 128
    $region61: #{tpu_custom_call.1} parent=1 // pred_fallthru
      _
    // Predicated region
    $region62: #{tpu_custom_call.1} parent=1 // pred_check
      _
    $region63: #{tpu_custom_call.1} parent=1 // pred_check_branch
      %812 = sbr.rel (0) target = $region65
    $region64: #{tpu_custom_call.1} parent=1 // pred_region
      %814 = dma.done [#allocation13], 128
    $region65: #{tpu_custom_call.1} parent=1 // pred_fallthru
      _
    // Predicated region
    $region66: #{tpu_custom_call.1} parent=1 // pred_check
      _
    $region67: #{tpu_custom_call.1} parent=1 // pred_check_branch
      %816 = sbr.rel (0) target = $region69
    $region68: #{tpu_custom_call.1} parent=1 // pred_region
      %818 = dma.done [#allocation13], 128
    $region69: #{tpu_custom_call.1} parent=1 // pred_fallthru
      _
    %819 = vsyncpa [#allocation6], 1
    %820 = vsyncpa [#allocation9], 1
    %821 = vsyncpa [#allocation7], 1
    %822 = vsyncpa [#allocation13], 1

// kernel: tpu_custom_call.1
$region0: #{tpu_custom_call.1}
  #allocation0 [shape = 'u32[]', space=smem, size = 0x4, offset = 0x4, fixed_abs, tag = 'smem constant byte address 0x4 - core index']
  #allocation1 [shape = 'u32[72,128]{1,0:T(1,128)}', space=vmem, size = 0x9000, scoped, tag = 'internal scratch']
  #allocation2 [shape = 'bf16[8,128]{1,0:T(8,128)(2,1)}', space=vmem, size = 0x800, scoped, tag = 'scratch operand']
  #allocation3 [shape = 'f32[8,1]{1,0:T(8,128)}', space=vmem, size = 0x1000, scoped, tag = 'scratch operand']
  #allocation4 [shape = 'f32[8,1]{1,0:T(8,128)}', space=vmem, size = 0x1000, scoped, tag = 'scratch operand']
  %s0 = inlined_call_operand.vmem [shape: bf16[8,256], index: 0, kind: input, shape index: {}]
  %s1 = inlined_call_operand.hbm [shape: f32[8,128], index: 1, kind: input, shape index: {}, may-alias: {1,8}]
  %s2 = inlined_call_operand.hbm [shape: bf16[256,512], index: 2, kind: input, shape index: {}]
  %s3 = inlined_call_operand.vmem [shape: f32[1,512], index: 3, kind: input, shape index: {}]
  %s4 = inlined_call_operand.hbm [shape: bf16[128,128], index: 4, kind: input, shape index: {}]
  %s5 = inlined_call_operand.vmem [shape: f32[1,128], index: 5, kind: input, shape index: {}]
  %s6 = inlined_call_operand.hbm [shape: f32[8,128], index: 6, kind: output, shape index: {0}]
  %s7 = inlined_call_operand.hbm [shape: f32[8,128], index: 7, kind: output, shape index: {1}]
  %s8 = inlined_call_operand.hbm [shape: f32[8,128], index: 8, kind: output, shape index: {2}, may-alias: {1,8}]
  %9 = xla_tuple %s6, %s7, %s8
  %s10 = sld [smem:[#allocation0]]
  $region70: #{tpu_custom_call.1} parent=0
    _
  %s12 = ssub.s32 1, %s10
  %s13 = scalar_select 0, %s12, %s10
  $region1: #{tpu_custom_call.1} parent=0
    #allocation5 [shape = 'u8[4096]{0}', space=vmem, size = 0x1000, scoped, tag = 'input window, operand 1, single buffered']
    #allocation6 [shape = 's32[1]{0}', space=sflag, size = 0x4, scoped, tag = 'scoped memory for tpu_custom_call.1']
    #allocation7 [shape = 's32[1]{0}', space=sflag, size = 0x4, scoped, tag = 'scoped memory for tpu_custom_call.1']
    #allocation8 [shape = 'u8[262144]{0}', space=vmem, size = 0x40000, scoped, tag = 'input window, operand 2, single buffered']
    #allocation9 [shape = 's32[1]{0}', space=sflag, size = 0x4, scoped, tag = 'scoped memory for tpu_custom_call.1']
    #allocation10 [shape = 'u8[32768]{0}', space=vmem, size = 0x8000, scoped, tag = 'input window, operand 4, single buffered']
    #allocation11 [shape = 'u8[4096]{0}', space=vmem, size = 0x1000, scoped, tag = 'output window, operand 0, single buffered']
    #allocation12 [shape = 'u8[4096]{0}', space=vmem, size = 0x1000, scoped, tag = 'output window, operand 1, single buffered']
    #allocation13 [shape = 's32[1]{0}', space=sflag, size = 0x4, scoped, tag = 'scoped memory for tpu_custom_call.1']
    #allocation14 [shape = 'u8[4096]{0}', space=vmem, size = 0x1000, scoped, tag = 'output window, operand 2, single buffered']
    %14 = vsyncpa [#allocation6], 0
    %15 = vsyncpa [#allocation9], 0
    %16 = vsyncpa [#allocation7], 0
    %17 = vsyncpa [#allocation13], 0
    // Predicated region
    $region2: #{tpu_custom_call.1} parent=1 // pred_check
      _
    $region3: #{tpu_custom_call.1} parent=1 // pred_check_branch
      %19 = sbr.rel (0) target = $region5
    $region4: #{tpu_custom_call.1} parent=1 // pred_region
      _
    $region5: #{tpu_custom_call.1} parent=1 // pred_fallthru
      _
    // Predicated region
    $region6: #{tpu_custom_call.1} parent=1 // pred_check
      _
    $region7: #{tpu_custom_call.1} parent=1 // pred_check_branch
      %21 = sbr.rel (0) target = $region9
    $region8: #{tpu_custom_call.1} parent=1 // pred_region
      %23 = vsyncadd [#allocation6], 0
      %s25 = sshll.u32 %s1, 4
      %s26 = int_to_ptr.hbm [resolvable:$true] %s25
      %s27 = sshll.u32 [#allocation5], 4
      %s28 = int_to_ptr.vmem [resolvable:$true] %s27
      %30 = dma.hbm_to_vmem [thread:$0]  %s26, 128, %s28, [#allocation6]
    $region9: #{tpu_custom_call.1} parent=1 // pred_fallthru
      _
    // Predicated region
    $region10: #{tpu_custom_call.1} parent=1 // pred_check
      _
    $region11: #{tpu_custom_call.1} parent=1 // pred_check_branch
      %32 = sbr.rel (0) target = $region13
    $region12: #{tpu_custom_call.1} parent=1 // pred_region
      %34 = vsyncadd [#allocation9], 0
      %s35 = sshll.u32 %s2, 4
      %s36 = int_to_ptr.hbm [resolvable:$true] %s35
      %s37 = sshll.u32 [#allocation8], 4
      %s38 = int_to_ptr.vmem [resolvable:$true] %s37
      %43 = dma.hbm_to_vmem [thread:$0]  %s36, 8192, %s38, [#allocation9], 256, 256, 16
    $region13: #{tpu_custom_call.1} parent=1 // pred_fallthru
      _
    // Predicated region
    $region14: #{tpu_custom_call.1} parent=1 // pred_check
      _
    $region15: #{tpu_custom_call.1} parent=1 // pred_check_branch
      %45 = sbr.rel (0) target = $region17
    $region16: #{tpu_custom_call.1} parent=1 // pred_region
      _
    $region17: #{tpu_custom_call.1} parent=1 // pred_fallthru
      _
    // Predicated region
    $region18: #{tpu_custom_call.1} parent=1 // pred_check
      _
    $region19: #{tpu_custom_call.1} parent=1 // pred_check_branch
      %47 = sbr.rel (0) target = $region21
    $region20: #{tpu_custom_call.1} parent=1 // pred_region
      %49 = vsyncadd [#allocation9], 0
      %s50 = sshll.u32 %s4, 4
      %s51 = int_to_ptr.hbm [resolvable:$true] %s50
      %s52 = sshll.u32 [#allocation10], 4
      %s53 = int_to_ptr.vmem [resolvable:$true] %s52
      %58 = dma.hbm_to_vmem [thread:$0]  %s51, 1024, %s53, [#allocation9], 64, 64, 4
    $region21: #{tpu_custom_call.1} parent=1 // pred_fallthru
      _
    // Predicated region
    $region22: #{tpu_custom_call.1} parent=1 // pred_check
      _
    $region23: #{tpu_custom_call.1} parent=1 // pred_check_branch
      %60 = sbr.rel (0) target = $region25
    $region24: #{tpu_custom_call.1} parent=1 // pred_region
      _
    $region25: #{tpu_custom_call.1} parent=1 // pred_fallthru
      _
    // Predicated region
    $region26: #{tpu_custom_call.1} parent=1 // pred_check
      _
    $region27: #{tpu_custom_call.1} parent=1 // pred_check_branch
      %62 = sbr.rel (0) target = $region29
    $region28: #{tpu_custom_call.1} parent=1 // pred_region
      %64 = dma.done [#allocation6], 128
    $region29: #{tpu_custom_call.1} parent=1 // pred_fallthru
      _
    // Predicated region
    $region30: #{tpu_custom_call.1} parent=1 // pred_check
      _
    $region31: #{tpu_custom_call.1} parent=1 // pred_check_branch
      %66 = sbr.rel (0) target = $region33
    $region32: #{tpu_custom_call.1} parent=1 // pred_region
      %68 = dma.done [#allocation9], 8192
    $region33: #{tpu_custom_call.1} parent=1 // pred_fallthru
      _
    // Predicated region
    $region34: #{tpu_custom_call.1} parent=1 // pred_check
      _
    $region35: #{tpu_custom_call.1} parent=1 // pred_check_branch
      %70 = sbr.rel (0) target = $region37
    $region36: #{tpu_custom_call.1} parent=1 // pred_region
      %72 = dma.done [#allocation9], 1024
    $region37: #{tpu_custom_call.1} parent=1 // pred_fallthru
      _
    %p73 = scmp.eq.s32.totalorder 0, 0
    // Predicated region
    $region38: #{tpu_custom_call.1} parent=1 // pred_check
      %p74 = pneg %p73
    $region39: #{tpu_custom_call.1} parent=1 // pred_check_branch
      %76 = sbr.rel (%p74) target = $region41
    $region40: #{tpu_custom_call.1} parent=1 // pred_region
      %v77 = vld [vmem:[#allocation5] sm:$0xff]
      %v78 = vld [vmem:[%s0] sm:$0xff]
      %v79 = vld [vmem:[#allocation8] sm:$0xff]
      %v80 = vld [vmem:[#allocation8 + $0x8] sm:$0xff]
      %v81 = vld [vmem:[#allocation8 + $0x10] sm:$0xff]
      %v82 = vld [vmem:[#allocation8 + $0x18] sm:$0xff]
      %v83 = vld [vmem:[#allocation8 + $0x20] sm:$0xff]
      %v84 = vld [vmem:[#allocation8 + $0x28] sm:$0xff]
      %v85 = vld [vmem:[#allocation8 + $0x30] sm:$0xff]
      %v86 = vld [vmem:[#allocation8 + $0x38] sm:$0xff]
      %v87 = vld [vmem:[#allocation8 + $0x40] sm:$0xff]
      %v88 = vld [vmem:[#allocation8 + $0x48] sm:$0xff]
      %v89 = vld [vmem:[#allocation8 + $0x50] sm:$0xff]
      %v90 = vld [vmem:[#allocation8 + $0x58] sm:$0xff]
      %v91 = vld [vmem:[#allocation8 + $0x60] sm:$0xff]
      %v92 = vld [vmem:[#allocation8 + $0x68] sm:$0xff]
      %v93 = vld [vmem:[#allocation8 + $0x70] sm:$0xff]
      %v94 = vld [vmem:[#allocation8 + $0x78] sm:$0xff]
      %v95 = vld [vmem:[#allocation8 + $0x80] sm:$0xff]
      %v96 = vld [vmem:[#allocation8 + $0x88] sm:$0xff]
      %v97 = vld [vmem:[#allocation8 + $0x90] sm:$0xff]
      %v98 = vld [vmem:[#allocation8 + $0x98] sm:$0xff]
      %v99 = vld [vmem:[#allocation8 + $0xa0] sm:$0xff]
      %v100 = vld [vmem:[#allocation8 + $0xa8] sm:$0xff]
      %v101 = vld [vmem:[#allocation8 + $0xb0] sm:$0xff]
      %v102 = vld [vmem:[#allocation8 + $0xb8] sm:$0xff]
      %v103 = vld [vmem:[#allocation8 + $0xc0] sm:$0xff]
      %v104 = vld [vmem:[#allocation8 + $0xc8] sm:$0xff]
      %v105 = vld [vmem:[#allocation8 + $0xd0] sm:$0xff]
      %v106 = vld [vmem:[#allocation8 + $0xd8] sm:$0xff]
      %v107 = vld [vmem:[#allocation8 + $0xe0] sm:$0xff]
      %v108 = vld [vmem:[#allocation8 + $0xe8] sm:$0xff]
      %v109 = vld [vmem:[#allocation8 + $0xf0] sm:$0xff]
      %v110 = vld [vmem:[#allocation8 + $0xf8] sm:$0xff]
      %v111 = vld [vmem:[#allocation8 + $0x100] sm:$0xff]
      %v112 = vld [vmem:[#allocation8 + $0x108] sm:$0xff]
      %v113 = vld [vmem:[#allocation8 + $0x110] sm:$0xff]
      %v114 = vld [vmem:[#allocation8 + $0x118] sm:$0xff]
      %v115 = vld [vmem:[#allocation8 + $0x120] sm:$0xff]
      %v116 = vld [vmem:[#allocation8 + $0x128] sm:$0xff]
      %v117 = vld [vmem:[#allocation8 + $0x130] sm:$0xff]
      %v118 = vld [vmem:[#allocation8 + $0x138] sm:$0xff]
      %v119 = vld [vmem:[#allocation8 + $0x140] sm:$0xff]
      %v120 = vld [vmem:[#allocation8 + $0x148] sm:$0xff]
      %v121 = vld [vmem:[#allocation8 + $0x150] sm:$0xff]
      %v122 = vld [vmem:[#allocation8 + $0x158] sm:$0xff]
      %v123 = vld [vmem:[#allocation8 + $0x160] sm:$0xff]
      %v124 = vld [vmem:[#allocation8 + $0x168] sm:$0xff]
      %v125 = vld [vmem:[#allocation8 + $0x170] sm:$0xff]
      %v126 = vld [vmem:[#allocation8 + $0x178] sm:$0xff]
      %v127 = vld [vmem:[#allocation8 + $0x180] sm:$0xff]
      %v128 = vld [vmem:[#allocation8 + $0x188] sm:$0xff]
      %v129 = vld [vmem:[#allocation8 + $0x190] sm:$0xff]
      %v130 = vld [vmem:[#allocation8 + $0x198] sm:$0xff]
      %v131 = vld [vmem:[#allocation8 + $0x1a0] sm:$0xff]
      %v132 = vld [vmem:[#allocation8 + $0x1a8] sm:$0xff]
      %v133 = vld [vmem:[#allocation8 + $0x1b0] sm:$0xff]
      %v134 = vld [vmem:[#allocation8 + $0x1b8] sm:$0xff]
      %v135 = vld [vmem:[#allocation8 + $0x1c0] sm:$0xff]
      %v136 = vld [vmem:[#allocation8 + $0x1c8] sm:$0xff]
      %v137 = vld [vmem:[#allocation8 + $0x1d0] sm:$0xff]
      %v138 = vld [vmem:[#allocation8 + $0x1d8] sm:$0xff]
      %v139 = vld [vmem:[#allocation8 + $0x1e0] sm:$0xff]
      %v140 = vld [vmem:[#allocation8 + $0x1e8] sm:$0xff]
      %v141 = vld [vmem:[#allocation8 + $0x1f0] sm:$0xff]
      %v142 = vld [vmem:[#allocation8 + $0x1f8] sm:$0xff]
      %v143 = vld [vmem:[%s3] sm:$0xf]
      %v145 = vperm.slane %v143, 0
      %v146 = vperm.slane %v143, 1
      %v147 = vperm.slane %v143, 2
      %v148 = vperm.slane %v143, 3
      %v154 = vunpack.c.l.b16 %v78
      %v155 = vunpack.c.h.b16 %v78
      %v156 = vpack.c.b16 %v154, %v154
      %v157 = vpack.c.b16 %v155, %v155
      %v224 = vunpack.c.l.b16 %v79
      %v225 = vunpack.c.h.b16 %v79
      %v226 = vunpack.c.l.b16 %v80
      %v227 = vunpack.c.h.b16 %v80
      %v228 = vunpack.c.l.b16 %v81
      %v229 = vunpack.c.h.b16 %v81
      %v230 = vunpack.c.l.b16 %v82
      %v231 = vunpack.c.h.b16 %v82
      %v232 = vunpack.c.l.b16 %v83
      %v233 = vunpack.c.h.b16 %v83
      %v234 = vunpack.c.l.b16 %v84
      %v235 = vunpack.c.h.b16 %v84
      %v236 = vunpack.c.l.b16 %v85
      %v237 = vunpack.c.h.b16 %v85
      %v238 = vunpack.c.l.b16 %v86
      %v239 = vunpack.c.h.b16 %v86
      %v240 = vunpack.c.l.b16 %v87
      %v241 = vunpack.c.h.b16 %v87
      %v242 = vunpack.c.l.b16 %v88
      %v243 = vunpack.c.h.b16 %v88
      %v244 = vunpack.c.l.b16 %v89
      %v245 = vunpack.c.h.b16 %v89
      %v246 = vunpack.c.l.b16 %v90
      %v247 = vunpack.c.h.b16 %v90
      %v248 = vunpack.c.l.b16 %v91
      %v249 = vunpack.c.h.b16 %v91
      %v250 = vunpack.c.l.b16 %v92
      %v251 = vunpack.c.h.b16 %v92
      %v252 = vunpack.c.l.b16 %v93
      %v253 = vunpack.c.h.b16 %v93
      %v254 = vunpack.c.l.b16 %v94
      %v255 = vunpack.c.h.b16 %v94
      %v256 = vunpack.c.l.b16 %v95
      %v257 = vunpack.c.h.b16 %v95
      %v258 = vunpack.c.l.b16 %v96
      %v259 = vunpack.c.h.b16 %v96
      %v260 = vunpack.c.l.b16 %v97
      %v261 = vunpack.c.h.b16 %v97
      %v262 = vunpack.c.l.b16 %v98
      %v263 = vunpack.c.h.b16 %v98
      %v264 = vunpack.c.l.b16 %v99
      %v265 = vunpack.c.h.b16 %v99
      %v266 = vunpack.c.l.b16 %v100
      %v267 = vunpack.c.h.b16 %v100
      %v268 = vunpack.c.l.b16 %v101
      %v269 = vunpack.c.h.b16 %v101
      %v270 = vunpack.c.l.b16 %v102
      %v271 = vunpack.c.h.b16 %v102
      %v272 = vunpack.c.l.b16 %v103
      %v273 = vunpack.c.h.b16 %v103
      %v274 = vunpack.c.l.b16 %v104
      %v275 = vunpack.c.h.b16 %v104
      %v276 = vunpack.c.l.b16 %v105
      %v277 = vunpack.c.h.b16 %v105
      %v278 = vunpack.c.l.b16 %v106
      %v279 = vunpack.c.h.b16 %v106
      %v280 = vunpack.c.l.b16 %v107
      %v281 = vunpack.c.h.b16 %v107
      %v282 = vunpack.c.l.b16 %v108
      %v283 = vunpack.c.h.b16 %v108
      %v284 = vunpack.c.l.b16 %v109
      %v285 = vunpack.c.h.b16 %v109
      %v286 = vunpack.c.l.b16 %v110
      %v287 = vunpack.c.h.b16 %v110
      %v288 = vunpack.c.l.b16 %v111
      %v289 = vunpack.c.h.b16 %v111
      %v290 = vunpack.c.l.b16 %v112
      %v291 = vunpack.c.h.b16 %v112
      %v292 = vunpack.c.l.b16 %v113
      %v293 = vunpack.c.h.b16 %v113
      %v294 = vunpack.c.l.b16 %v114
      %v295 = vunpack.c.h.b16 %v114
      %v296 = vunpack.c.l.b16 %v115
      %v297 = vunpack.c.h.b16 %v115
      %v298 = vunpack.c.l.b16 %v116
      %v299 = vunpack.c.h.b16 %v116
      %v300 = vunpack.c.l.b16 %v117
      %v301 = vunpack.c.h.b16 %v117
      %v302 = vunpack.c.l.b16 %v118
      %v303 = vunpack.c.h.b16 %v118
      %v304 = vunpack.c.l.b16 %v119
      %v305 = vunpack.c.h.b16 %v119
      %v306 = vunpack.c.l.b16 %v120
      %v307 = vunpack.c.h.b16 %v120
      %v308 = vunpack.c.l.b16 %v121
      %v309 = vunpack.c.h.b16 %v121
      %v310 = vunpack.c.l.b16 %v122
      %v311 = vunpack.c.h.b16 %v122
      %v312 = vunpack.c.l.b16 %v123
      %v313 = vunpack.c.h.b16 %v123
      %v314 = vunpack.c.l.b16 %v124
      %v315 = vunpack.c.h.b16 %v124
      %v316 = vunpack.c.l.b16 %v125
      %v317 = vunpack.c.h.b16 %v125
      %v318 = vunpack.c.l.b16 %v126
      %v319 = vunpack.c.h.b16 %v126
      %v320 = vunpack.c.l.b16 %v127
      %v321 = vunpack.c.h.b16 %v127
      %v322 = vunpack.c.l.b16 %v128
      %v323 = vunpack.c.h.b16 %v128
      %v324 = vunpack.c.l.b16 %v129
      %v325 = vunpack.c.h.b16 %v129
      %v326 = vunpack.c.l.b16 %v130
      %v327 = vunpack.c.h.b16 %v130
      %v328 = vunpack.c.l.b16 %v131
      %v329 = vunpack.c.h.b16 %v131
      %v330 = vunpack.c.l.b16 %v132
      %v331 = vunpack.c.h.b16 %v132
      %v332 = vunpack.c.l.b16 %v133
      %v333 = vunpack.c.h.b16 %v133
      %v334 = vunpack.c.l.b16 %v134
      %v335 = vunpack.c.h.b16 %v134
      %v336 = vunpack.c.l.b16 %v135
      %v337 = vunpack.c.h.b16 %v135
      %v338 = vunpack.c.l.b16 %v136
      %v339 = vunpack.c.h.b16 %v136
      %v340 = vunpack.c.l.b16 %v137
      %v341 = vunpack.c.h.b16 %v137
      %v342 = vunpack.c.l.b16 %v138
      %v343 = vunpack.c.h.b16 %v138
      %v344 = vunpack.c.l.b16 %v139
      %v345 = vunpack.c.h.b16 %v139
      %v346 = vunpack.c.l.b16 %v140
      %v347 = vunpack.c.h.b16 %v140
      %v348 = vunpack.c.l.b16 %v141
      %v349 = vunpack.c.h.b16 %v141
      %v350 = vunpack.c.l.b16 %v142
      %v351 = vunpack.c.h.b16 %v142
      %v352 = vpack.c.b16 %v228, %v224
      %v353 = vpack.c.b16 %v229, %v225
      %v354 = vpack.c.b16 %v230, %v226
      %v355 = vpack.c.b16 %v231, %v227
      %v356 = vpack.c.b16 %v236, %v232
      %v357 = vpack.c.b16 %v237, %v233
      %v358 = vpack.c.b16 %v238, %v234
      %v359 = vpack.c.b16 %v239, %v235
      %v360 = vpack.c.b16 %v244, %v240
      %v361 = vpack.c.b16 %v245, %v241
      %v362 = vpack.c.b16 %v246, %v242
      %v363 = vpack.c.b16 %v247, %v243
      %v364 = vpack.c.b16 %v252, %v248
      %v365 = vpack.c.b16 %v253, %v249
      %v366 = vpack.c.b16 %v254, %v250
      %v367 = vpack.c.b16 %v255, %v251
      %v368 = vpack.c.b16 %v260, %v256
      %v369 = vpack.c.b16 %v261, %v257
      %v370 = vpack.c.b16 %v262, %v258
      %v371 = vpack.c.b16 %v263, %v259
      %v372 = vpack.c.b16 %v268, %v264
      %v373 = vpack.c.b16 %v269, %v265
      %v374 = vpack.c.b16 %v270, %v266
      %v375 = vpack.c.b16 %v271, %v267
      %v376 = vpack.c.b16 %v276, %v272
      %v377 = vpack.c.b16 %v277, %v273
      %v378 = vpack.c.b16 %v278, %v274
      %v379 = vpack.c.b16 %v279, %v275
      %v380 = vpack.c.b16 %v284, %v280
      %v381 = vpack.c.b16 %v285, %v281
      %v382 = vpack.c.b16 %v286, %v282
      %v383 = vpack.c.b16 %v287, %v283
      %v384 = vpack.c.b16 %v292, %v288
      %v385 = vpack.c.b16 %v293, %v289
      %v386 = vpack.c.b16 %v294, %v290
      %v387 = vpack.c.b16 %v295, %v291
      %v388 = vpack.c.b16 %v300, %v296
      %v389 = vpack.c.b16 %v301, %v297
      %v390 = vpack.c.b16 %v302, %v298
      %v391 = vpack.c.b16 %v303, %v299
      %v392 = vpack.c.b16 %v308, %v304
      %v393 = vpack.c.b16 %v309, %v305
      %v394 = vpack.c.b16 %v310, %v306
      %v395 = vpack.c.b16 %v311, %v307
      %v396 = vpack.c.b16 %v316, %v312
      %v397 = vpack.c.b16 %v317, %v313
      %v398 = vpack.c.b16 %v318, %v314
      %v399 = vpack.c.b16 %v319, %v315
      %v400 = vpack.c.b16 %v324, %v320
      %v401 = vpack.c.b16 %v325, %v321
      %v402 = vpack.c.b16 %v326, %v322
      %v403 = vpack.c.b16 %v327, %v323
      %v404 = vpack.c.b16 %v332, %v328
      %v405 = vpack.c.b16 %v333, %v329
      %v406 = vpack.c.b16 %v334, %v330
      %v407 = vpack.c.b16 %v335, %v331
      %v408 = vpack.c.b16 %v340, %v336
      %v409 = vpack.c.b16 %v341, %v337
      %v410 = vpack.c.b16 %v342, %v338
      %v411 = vpack.c.b16 %v343, %v339
      %v412 = vpack.c.b16 %v348, %v344
      %v413 = vpack.c.b16 %v349, %v345
      %v414 = vpack.c.b16 %v350, %v346
      %v415 = vpack.c.b16 %v351, %v347
      %480 = vmatpush.bf16.msra.mxu0 %v380
      %481 = vmatpush.bf16.msra.mxu0 %v376
      %482 = vmatpush.bf16.msra.mxu0 %v372
      %483 = vmatpush.bf16.msra.mxu0 %v368
      %484 = vmatpush.bf16.msra.mxu0 %v364
      %485 = vmatpush.bf16.msra.mxu0 %v360
      %486 = vmatpush.bf16.msra.mxu0 %v356
      %487 = vmatpush.bf16.msra.mxu0 %v352
      %488 = vmatmul.bf16.gmra.mxu0 %v156
      %v489 = vpop.f32.mrf.mxu0
      %v490 = vadd.f32 %v145, %v489
      %v491 = vpop.f32.mrf.mxu0
      %492 = vdwg.mxu0
      %493 = vmatpush.bf16.msra.mxu0 %v412
      %494 = vmatpush.bf16.msra.mxu0 %v408
      %495 = vmatpush.bf16.msra.mxu0 %v404
      %496 = vmatpush.bf16.msra.mxu0 %v400
      %497 = vmatpush.bf16.msra.mxu0 %v396
      %498 = vmatpush.bf16.msra.mxu0 %v392
      %499 = vmatpush.bf16.msra.mxu0 %v388
      %500 = vmatpush.bf16.msra.mxu0 %v384
      %501 = vmatmul.bf16.gmra.mxu0 %v157
      %v502 = vpop.f32.mrf.mxu0
      %v503 = vadd.f32 %v490, %v502
      %v504 = vpop.f32.mrf.mxu0
      %505 = vdwg.mxu0
      %506 = vmatpush.bf16.msra.mxu0 %v381
      %507 = vmatpush.bf16.msra.mxu0 %v377
      %508 = vmatpush.bf16.msra.mxu0 %v373
      %509 = vmatpush.bf16.msra.mxu0 %v369
      %510 = vmatpush.bf16.msra.mxu0 %v365
      %511 = vmatpush.bf16.msra.mxu0 %v361
      %512 = vmatpush.bf16.msra.mxu0 %v357
      %513 = vmatpush.bf16.msra.mxu0 %v353
      %514 = vmatmul.bf16.gmra.mxu0 %v156
      %v515 = vpop.f32.mrf.mxu0
      %v516 = vadd.f32 %v146, %v515
      %v517 = vpop.f32.mrf.mxu0
      %518 = vdwg.mxu0
      %519 = vmatpush.bf16.msra.mxu0 %v413
      %520 = vmatpush.bf16.msra.mxu0 %v409
      %521 = vmatpush.bf16.msra.mxu0 %v405
      %522 = vmatpush.bf16.msra.mxu0 %v401
      %523 = vmatpush.bf16.msra.mxu0 %v397
      %524 = vmatpush.bf16.msra.mxu0 %v393
      %525 = vmatpush.bf16.msra.mxu0 %v389
      %526 = vmatpush.bf16.msra.mxu0 %v385
      %527 = vmatmul.bf16.gmra.mxu0 %v157
      %v528 = vpop.f32.mrf.mxu0
      %v529 = vadd.f32 %v516, %v528
      %v530 = vpop.f32.mrf.mxu0
      %531 = vdwg.mxu0
      %532 = vmatpush.bf16.msra.mxu0 %v382
      %533 = vmatpush.bf16.msra.mxu0 %v378
      %534 = vmatpush.bf16.msra.mxu0 %v374
      %535 = vmatpush.bf16.msra.mxu0 %v370
      %536 = vmatpush.bf16.msra.mxu0 %v366
      %537 = vmatpush.bf16.msra.mxu0 %v362
      %538 = vmatpush.bf16.msra.mxu0 %v358
      %539 = vmatpush.bf16.msra.mxu0 %v354
      %540 = vmatmul.bf16.gmra.mxu0 %v156
      %v541 = vpop.f32.mrf.mxu0
      %v542 = vadd.f32 %v147, %v541
      %v543 = vpop.f32.mrf.mxu0
      %544 = vdwg.mxu0
      %545 = vmatpush.bf16.msra.mxu0 %v414
      %546 = vmatpush.bf16.msra.mxu0 %v410
      %547 = vmatpush.bf16.msra.mxu0 %v406
      %548 = vmatpush.bf16.msra.mxu0 %v402
      %549 = vmatpush.bf16.msra.mxu0 %v398
      %550 = vmatpush.bf16.msra.mxu0 %v394
      %551 = vmatpush.bf16.msra.mxu0 %v390
      %552 = vmatpush.bf16.msra.mxu0 %v386
      %553 = vmatmul.bf16.gmra.mxu0 %v157
      %v554 = vpop.f32.mrf.mxu0
      %v555 = vadd.f32 %v542, %v554
      %v556 = vpop.f32.mrf.mxu0
      %557 = vdwg.mxu0
      %558 = vmatpush.bf16.msra.mxu0 %v383
      %559 = vmatpush.bf16.msra.mxu0 %v379
      %560 = vmatpush.bf16.msra.mxu0 %v375
      %561 = vmatpush.bf16.msra.mxu0 %v371
      %562 = vmatpush.bf16.msra.mxu0 %v367
      %563 = vmatpush.bf16.msra.mxu0 %v363
      %564 = vmatpush.bf16.msra.mxu0 %v359
      %565 = vmatpush.bf16.msra.mxu0 %v355
      %566 = vmatmul.bf16.gmra.mxu0 %v156
      %v567 = vpop.f32.mrf.mxu0
      %v568 = vadd.f32 %v148, %v567
      %v569 = vpop.f32.mrf.mxu0
      %570 = vdwg.mxu0
      %571 = vmatpush.bf16.msra.mxu0 %v415
      %572 = vmatpush.bf16.msra.mxu0 %v411
      %573 = vmatpush.bf16.msra.mxu0 %v407
      %574 = vmatpush.bf16.msra.mxu0 %v403
      %575 = vmatpush.bf16.msra.mxu0 %v399
      %576 = vmatpush.bf16.msra.mxu0 %v395
      %577 = vmatpush.bf16.msra.mxu0 %v391
      %578 = vmatpush.bf16.msra.mxu0 %v387
      %579 = vmatmul.bf16.gmra.mxu0 %v157
      %v580 = vpop.f32.mrf.mxu0
      %v581 = vadd.f32 %v568, %v580
      %v582 = vpop.f32.mrf.mxu0
      %583 = vdwg.mxu0
      %v584 = vxor.u32 %v503, 2147483648
      %v585 = vmul.f32 %v584, 1.442695
      %v586 = vpow.pop %v585
      %v587 = vadd.f32 %v586, 1.0
      %v588 = vrcp.pop %v587
      %v589 = vmul.f32 %v587, %v588
      %v590 = vsub.f32 1.0, %v589
      %v591 = vmul.f32 %v588, %v590
      %v592 = vadd.f32 %v588, %v591
      %vm593 = vweird.f32 %v587
      %vm594 = vweird.f32 %v588
      %vm595 = vmor %vm593, %vm594
      %v596 = vsel %vm595, %v588, %v592
      %v597 = vand.u32 2147483647, %v587
      %vm598 = vcmp.eq.f32.partialorder %v597, 8.507059e+37
      %v599 = vand.u32 %v587, 2147483648
      %v600 = vor.u32 1.1754944e-38, %v599
      %v601 = vsel %vm598, %v600, %v596
      %v602 = vmul.f32 1.0, %v601
      %v603 = vxor.u32 %v529, 2147483648
      %v604 = vmul.f32 %v603, 1.442695
      %v605 = vpow.pop %v604
      %v606 = vadd.f32 %v605, 1.0
      %v607 = vrcp.pop %v606
      %v608 = vmul.f32 %v606, %v607
      %v609 = vsub.f32 1.0, %v608
      %v610 = vmul.f32 %v607, %v609
      %v611 = vadd.f32 %v607, %v610
      %vm612 = vweird.f32 %v606
      %vm613 = vweird.f32 %v607
      %vm614 = vmor %vm612, %vm613
      %v615 = vsel %vm614, %v607, %v611
      %v616 = vand.u32 2147483647, %v606
      %vm617 = vcmp.eq.f32.partialorder %v616, 8.507059e+37
      %v618 = vand.u32 %v606, 2147483648
      %v619 = vor.u32 1.1754944e-38, %v618
      %v620 = vsel %vm617, %v619, %v615
      %v621 = vmul.f32 1.0, %v620
      %v622 = vtanh.pop %v555
      %v623 = vxor.u32 %v581, 2147483648
      %v624 = vmul.f32 %v623, 1.442695
      %v625 = vpow.pop %v624
      %v626 = vadd.f32 %v625, 1.0
      %v627 = vrcp.pop %v626
      %v628 = vmul.f32 %v626, %v627
      %v629 = vsub.f32 1.0, %v628
      %v630 = vmul.f32 %v627, %v629
      %v631 = vadd.f32 %v627, %v630
      %vm632 = vweird.f32 %v626
      %vm633 = vweird.f32 %v627
      %vm634 = vmor %vm632, %vm633
      %v635 = vsel %vm634, %v627, %v631
      %v636 = vand.u32 2147483647, %v626
      %vm637 = vcmp.eq.f32.partialorder %v636, 8.507059e+37
      %v638 = vand.u32 %v626, 2147483648
      %v639 = vor.u32 1.1754944e-38, %v638
      %v640 = vsel %vm637, %v639, %v635
      %v641 = vmul.f32 1.0, %v640
      %v642 = vmul.f32 %v621, %v77
      %v643 = vmul.f32 %v602, %v622
      %v644 = vadd.f32 %v642, %v643
      %v645 = vtanh.pop %v644
      %v646 = vmul.f32 %v641, %v645
      %647 = vst [vmem:[#allocation14] sm:$0xff] %v644
      %v648 = vpack.c.bf16 %v646, %v646
      %649 = vst [vmem:[#allocation2] sm:$0xf] %v648
      %vm650 = vcmask 7168
      %651 = vst.msk [vmem:[#allocation3] sm:$0xff] %vm650, -1e+30
      %652 = vst.msk [vmem:[#allocation4] sm:$0xff] %vm650, 0.0
    $region41: #{tpu_custom_call.1} parent=1 // pred_fallthru
      _
    %v653 = vld [vmem:[#allocation2] sm:$0xf]
    %v654 = vld [vmem:[#allocation10] sm:$0xf]
    %v655 = vld [vmem:[#allocation10 + $0x4] sm:$0xf]
    %v656 = vld [vmem:[#allocation10 + $0x8] sm:$0xf]
    %v657 = vld [vmem:[#allocation10 + $0xc] sm:$0xf]
    %v658 = vld [vmem:[#allocation10 + $0x10] sm:$0xf]
    %v659 = vld [vmem:[#allocation10 + $0x14] sm:$0xf]
    %v660 = vld [vmem:[#allocation10 + $0x18] sm:$0xf]
    %v661 = vld [vmem:[#allocation10 + $0x1c] sm:$0xf]
    %v662 = vld [vmem:[#allocation10 + $0x20] sm:$0xf]
    %v663 = vld [vmem:[#allocation10 + $0x24] sm:$0xf]
    %v664 = vld [vmem:[#allocation10 + $0x28] sm:$0xf]
    %v665 = vld [vmem:[#allocation10 + $0x2c] sm:$0xf]
    %v666 = vld [vmem:[#allocation10 + $0x30] sm:$0xf]
    %v667 = vld [vmem:[#allocation10 + $0x34] sm:$0xf]
    %v668 = vld [vmem:[#allocation10 + $0x38] sm:$0xf]
    %v669 = vld [vmem:[#allocation10 + $0x3c] sm:$0xf]
    %v670 = vld [vmem:[%s5] sm:$0x1]
    %v672 = vperm.slane %v670, 0
    %v690 = vunpack.c.l.b16 %v654
    %v691 = vunpack.c.l.b16 %v655
    %v692 = vunpack.c.l.b16 %v656
    %v693 = vunpack.c.l.b16 %v657
    %v694 = vunpack.c.l.b16 %v658
    %v695 = vunpack.c.l.b16 %v659
    %v696 = vunpack.c.l.b16 %v660
    %v697 = vunpack.c.l.b16 %v661
    %v698 = vunpack.c.l.b16 %v662
    %v699 = vunpack.c.l.b16 %v663
    %v700 = vunpack.c.l.b16 %v664
    %v701 = vunpack.c.l.b16 %v665
    %v702 = vunpack.c.l.b16 %v666
    %v703 = vunpack.c.l.b16 %v667
    %v704 = vunpack.c.l.b16 %v668
    %v705 = vunpack.c.l.b16 %v669
    %v706 = vpack.c.b16 %v691, %v690
    %v707 = vpack.c.b16 %v693, %v692
    %v708 = vpack.c.b16 %v695, %v694
    %v709 = vpack.c.b16 %v697, %v696
    %v710 = vpack.c.b16 %v699, %v698
    %v711 = vpack.c.b16 %v701, %v700
    %v712 = vpack.c.b16 %v703, %v702
    %v713 = vpack.c.b16 %v705, %v704
    %722 = vmatpush.bf16.msra.mxu0 %v713
    %723 = vmatpush.bf16.msra.mxu0 %v712
    %724 = vmatpush.bf16.msra.mxu0 %v711
    %725 = vmatpush.bf16.msra.mxu0 %v710
    %726 = vmatpush.bf16.msra.mxu0 %v709
    %727 = vmatpush.bf16.msra.mxu0 %v708
    %728 = vmatpush.bf16.msra.mxu0 %v707
    %729 = vmatpush.bf16.msra.mxu0 %v706
    %730 = vmatmul.bf16.gmra.mxu0 %v653
    %v731 = vpop.f32.mrf.mxu0
    %v732 = vadd.f32 %v672, %v731
    %v733 = vpop.f32.mrf.mxu0
    %734 = vdwg.mxu0
    %735 = vst [vmem:[#allocation11] sm:$0xff] %v732
    %v736 = vld [vmem:[#allocation3] sm:$0xff]
    %737 = vmax.xlane.f32.xlu0 %v732
    %v738 = vpop.xlane.xlu0 %737
    %v739 = vmax.f32 %v736, %v738
    %v740 = vld [vmem:[#allocation4] sm:$0xff]
    %v741 = vsub.f32 %v736, %v739
    %v742 = vmul.f32 %v741, 1.442695
    %v743 = vpow.pop %v742
    %v744 = vmul.f32 %v740, %v743
    %746 = vset.pattern.permute.xlu0 0
    %747 = vperm.xlu0 %746, %v739
    %v748 = vpop.permute.xlu0 %747
    %v750 = vsub.f32 %v732, %v748
    %v751 = vmul.f32 %v750, 1.442695
    %v752 = vpow.pop %v751
    %753 = vadd.xlane.f32.xlu0 %v752
    %v754 = vpop.xlane.xlu0 %753
    %v755 = vadd.f32 %v744, %v754
    %vm756 = vcmask 7168
    %757 = vst.msk [vmem:[#allocation4] sm:$0xff] %vm756, %v755
    %758 = vst.msk [vmem:[#allocation3] sm:$0xff] %vm756, %v739
    // Predicated region
    $region42: #{tpu_custom_call.1} parent=1 // pred_check
      %p759 = pneg %p73
    $region43: #{tpu_custom_call.1} parent=1 // pred_check_branch
      %761 = sbr.rel (%p759) target = $region45
    $region44: #{tpu_custom_call.1} parent=1 // pred_region
      %v762 = vld [vmem:[#allocation3] sm:$0xff]
      %v763 = vld [vmem:[#allocation4] sm:$0xff]
      %v764 = vlog2.pop %v763
      %v765 = vmul.f32 %v764, 0.6931472
      %v766 = vadd.f32 %v762, %v765
      %768 = vset.pattern.permute.xlu0 0
      %769 = vperm.xlu0 %768, %v766
      %v770 = vpop.permute.xlu0 %769
      %v772 = vadd.f32 %v770, 0.0
      %773 = vst [vmem:[#allocation12] sm:$0xff] %v772
    $region45: #{tpu_custom_call.1} parent=1 // pred_fallthru
      _
    // Predicated region
    $region46: #{tpu_custom_call.1} parent=1 // pred_check
      _
    $region47: #{tpu_custom_call.1} parent=1 // pred_check_branch
      %775 = sbr.rel (0) target = $region49
    $region48: #{tpu_custom_call.1} parent=1 // pred_region
      %777 = vsyncadd [#allocation7], 0
      %s779 = sshll.u32 [#allocation11], 4
      %s780 = int_to_ptr.vmem [resolvable:$true] %s779
      %s781 = sshll.u32 %s6, 4
      %s782 = int_to_ptr.hbm [resolvable:$true] %s781
      %784 = dma.vmem_to_hbm [thread:$0]  %s780, 128, %s782, [#allocation7]
    $region49: #{tpu_custom_call.1} parent=1 // pred_fallthru
      _
    // Predicated region
    $region50: #{tpu_custom_call.1} parent=1 // pred_check
      _
    $region51: #{tpu_custom_call.1} parent=1 // pred_check_branch
      %786 = sbr.rel (0) target = $region53
    $region52: #{tpu_custom_call.1} parent=1 // pred_region
      %788 = vsyncadd [#allocation13], 0
      %s790 = sshll.u32 [#allocation12], 4
      %s791 = int_to_ptr.vmem [resolvable:$true] %s790
      %s792 = sshll.u32 %s7, 4
      %s793 = int_to_ptr.hbm [resolvable:$true] %s792
      %795 = dma.vmem_to_hbm [thread:$0]  %s791, 128, %s793, [#allocation13]
    $region53: #{tpu_custom_call.1} parent=1 // pred_fallthru
      _
    // Predicated region
    $region54: #{tpu_custom_call.1} parent=1 // pred_check
      _
    $region55: #{tpu_custom_call.1} parent=1 // pred_check_branch
      %797 = sbr.rel (0) target = $region57
    $region56: #{tpu_custom_call.1} parent=1 // pred_region
      %799 = vsyncadd [#allocation13], 0
      %s801 = sshll.u32 [#allocation14], 4
      %s802 = int_to_ptr.vmem [resolvable:$true] %s801
      %s803 = sshll.u32 %s8, 4
      %s804 = int_to_ptr.hbm [resolvable:$true] %s803
      %806 = dma.vmem_to_hbm [thread:$0]  %s802, 128, %s804, [#allocation13]
    $region57: #{tpu_custom_call.1} parent=1 // pred_fallthru
      _
    // Predicated region
    $region58: #{tpu_custom_call.1} parent=1 // pred_check
      _
    $region59: #{tpu_custom_call.1} parent=1 // pred_check_branch
      %808 = sbr.rel (0) target = $region61
    $region60: #{tpu_custom_call.1} parent=1 // pred_region
      %810 = dma.done [#allocation7], 128
    $region61: #{tpu_custom_call.1} parent=1 // pred_fallthru
      _
    // Predicated region
    $region62: #{tpu_custom_call.1} parent=1 // pred_check
      _
    $region63: #{tpu_custom_call.1} parent=1 // pred_check_branch
      %812 = sbr.rel (0) target = $region65
    $region64: #{tpu_custom_call.1} parent=1 // pred_region
      %814 = dma.done [#allocation13], 128
    $region65: #{tpu_custom_call.1} parent=1 // pred_fallthru
      _
    // Predicated region
    $region66: #{tpu_custom_call.1} parent=1 // pred_check
      _
    $region67: #{tpu_custom_call.1} parent=1 // pred_check_branch
      %816 = sbr.rel (0) target = $region69
    $region68: #{tpu_custom_call.1} parent=1 // pred_region
      %818 = dma.done [#allocation13], 128
    $region69: #{tpu_custom_call.1} parent=1 // pred_fallthru
      _
    %819 = vsyncpa [#allocation6], 1
    %820 = vsyncpa [#allocation9], 1
    %821 = vsyncpa [#allocation7], 1
    %822 = vsyncpa [#allocation13], 1

</llo_original>
